<compile_context>
chip_gen: v7x
topology: tpu7x:2x2x1
jax: 0.10.0
libtpu: 0.0.40
codegen_flags: <defaults>
</compile_context>

<pallas_src>
import functools

import jax
import jax.numpy as jnp
from jax import lax
from jax.experimental import pallas as pl
from jax.experimental.pallas import tpu as pltpu


def _round_up(x, m):
    return ((x + m - 1) // m) * m


def _pos_mlp_kernel(x_ref, w1_ref, b1_ref, g_ref, beta_ref, w2_ref, b2_ref,
                    o_ref, *, eps, inv_f, dim, vpu_linear1):
    # x: (tm, dim); w1: (dim, Fp); b1/g/beta: (1, Fp); w2: (Fp, F);
    # b2: (1, F); o: (tm, F)
    b1 = b1_ref[...].astype(jnp.float32)

    if vpu_linear1:
        # K = dim is tiny (e.g. 3): do the first linear as `dim` broadcast
        # FMAs on the VPU instead of a mostly padded MXU pass.
        x = x_ref[...].astype(jnp.float32)
        w1 = w1_ref[...].astype(jnp.float32)
        h = b1
        for d in range(dim):               # static, unrolled
            h = h + x[:, d:d + 1] * w1[d:d + 1, :]
    else:
        h = jnp.dot(x_ref[...], w1_ref[...],
                    preferred_element_type=jnp.float32) + b1

    # LayerNorm over the true feature count (padded lanes of h are exactly 0,
    # so lane sums over Fp equal sums over the real F lanes).
    s1 = jnp.sum(h, axis=-1, keepdims=True)
    s2 = jnp.sum(h * h, axis=-1, keepdims=True)
    mean = s1 * inv_f
    var = jnp.maximum(s2 * inv_f - mean * mean, 0.0)
    inv_std = lax.rsqrt(var + eps)
    h = (h - mean) * inv_std
    h = h * g_ref[...].astype(jnp.float32) + beta_ref[...].astype(jnp.float32)

    # ReLU
    h = jnp.maximum(h, 0.0)

    # Linear 2 on the MXU: feed the weights' native dtype, accumulate in f32.
    # w2's padded K rows are zero, its column count is the true F, so the
    # result is (tm, F) and goes straight to the output (no post-slice).
    out = jnp.dot(h.astype(w2_ref.dtype), w2_ref[...],
                  preferred_element_type=jnp.float32)
    out = out + b2_ref[...].astype(jnp.float32)

    o_ref[...] = out.astype(o_ref.dtype)


def pos_embedding_learned_mlp(xyz, params, *, tile_m=1024, eps=1e-5):
    """Forward pass matching PositionEmbeddingLearnedMLP.forward.

    xyz: (N, dim), (B, N, dim) or (B, V, H, W, dim); output has the same
    leading shape with last dim = F (= num_pos_feats).
    """
    w1, b1, gamma, beta, w2, b2 = params
    dim, F = w1.shape

    shape_len = xyz.ndim
    if shape_len == 5:
        lead_shape = xyz.shape[:4]
    elif shape_len == 3:
        lead_shape = xyz.shape[:2]
    elif shape_len == 2:
        lead_shape = xyz.shape[:1]
    else:
        raise ValueError("xyz should be 2, 3 or 5 dimensional")

    x2d = xyz.reshape(-1, dim)
    M = x2d.shape[0]

    # --- lane-pad the hidden feature dimension (K side only for W2) ---------
    F_pad = _round_up(F, 128)
    b1 = b1.reshape(1, F)
    gamma = gamma.reshape(1, F)
    beta = beta.reshape(1, F)
    b2 = b2.reshape(1, F)
    if F_pad != F:
        pc = F_pad - F
        w1 = jnp.pad(w1, ((0, 0), (0, pc)))        # zero cols -> padded h = 0
        b1 = jnp.pad(b1, ((0, 0), (0, pc)))
        gamma = jnp.pad(gamma, ((0, 0), (0, pc)))  # zero gamma on padded lanes
        beta = jnp.pad(beta, ((0, 0), (0, pc)))
        w2 = jnp.pad(w2, ((0, pc), (0, 0)))        # pad K rows only; N stays F

    # --- row tiling: big tiles, clamped to the problem size; Pallas masks
    # the partial last block (op is row-pointwise, so this is safe) ----------
    tile_m = _round_up(max(8, min(tile_m, M)), 8)
    grid = (pl.cdiv(M, tile_m),)

    kernel = functools.partial(
        _pos_mlp_kernel,
        eps=eps,
        inv_f=1.0 / float(F),
        dim=dim,
        vpu_linear1=(dim <= 8),
    )

    out = pl.pallas_call(
        kernel,
        out_shape=jax.ShapeDtypeStruct((M, F), xyz.dtype),
        grid_spec=pltpu.PrefetchScalarGridSpec(
            num_scalar_prefetch=0,
            grid=grid,
            in_specs=[
                pl.BlockSpec((tile_m, dim), lambda i: (i, 0)),    # x tile
                pl.BlockSpec((dim, F_pad), lambda i: (0, 0)),     # W1
                pl.BlockSpec((1, F_pad), lambda i: (0, 0)),       # b1
                pl.BlockSpec((1, F_pad), lambda i: (0, 0)),       # gamma
                pl.BlockSpec((1, F_pad), lambda i: (0, 0)),       # beta
                pl.BlockSpec((F_pad, F), lambda i: (0, 0)),       # W2 (K padded)
                pl.BlockSpec((1, F), lambda i: (0, 0)),           # b2
            ],
            out_specs=pl.BlockSpec((tile_m, F), lambda i: (i, 0)),
        ),
        compiler_params=pltpu.CompilerParams(
            dimension_semantics=("parallel",),
            vmem_limit_bytes=32 * 1024 * 1024,
        ),
    )(x2d, w1, b1, gamma, beta, w2, b2)

    return out.reshape(*lead_shape, F)


def init_params(key, dim, num_pos_feats, dtype=jnp.float32):
    """Init mirroring the torch module: xavier-uniform weights, nn.Linear
    default uniform biases, LayerNorm gamma=1 / beta=0.  Weights stored as
    (in, out), i.e. transposed vs. torch's nn.Linear weight."""
    k1, k2, k3, k4 = jax.random.split(key, 4)

    def xavier(k, fan_in, fan_out):
        limit = (6.0 / (fan_in + fan_out)) ** 0.5
        return jax.random.uniform(k, (fan_in, fan_out), dtype,
                                  minval=-limit, maxval=limit)

    w1 = xavier(k1, dim, num_pos_feats)
    b1 = jax.random.uniform(k2, (1, num_pos_feats), dtype,
                            minval=-(1.0 / dim) ** 0.5,
                            maxval=(1.0 / dim) ** 0.5)
    gamma = jnp.ones((1, num_pos_feats), dtype)
    beta = jnp.zeros((1, num_pos_feats), dtype)
    w2 = xavier(k3, num_pos_feats, num_pos_feats)
    b2 = jax.random.uniform(k4, (1, num_pos_feats), dtype,
                            minval=-(1.0 / num_pos_feats) ** 0.5,
                            maxval=(1.0 / num_pos_feats) ** 0.5)
    return (w1, b1, gamma, beta, w2, b2)


def _reference(xyz, params, eps=1e-5):
    w1, b1, gamma, beta, w2, b2 = params
    dim, F = w1.shape
    x = xyz.astype(jnp.float32).reshape(-1, dim)
    h = x @ w1.astype(jnp.float32) + b1.reshape(1, F)
    mu = jnp.mean(h, axis=-1, keepdims=True)
    var = jnp.mean((h - mu) ** 2, axis=-1, keepdims=True)
    h = (h - mu) * lax.rsqrt(var + eps) * gamma.reshape(1, F) + beta.reshape(1, F)
    h = jnp.maximum(h, 0.0)
    out = h @ w2.astype(jnp.float32) + b2.reshape(1, F)
    return out.reshape(*xyz.shape[:-1], F).astype(xyz.dtype)


if __name__ == "__main__":
    key = jax.random.PRNGKey(0)
    k_param, k_x1, k_x2, k_x3 = jax.random.split(key, 4)

    dim = 3
    num_pos_feats = 288      # torch default; exercises internal F -> 384 padding

    params = init_params(k_param, dim, num_pos_feats)

    # (B, N, dim) case
    xyz3 = jax.random.normal(k_x1, (2, 64, dim), dtype=jnp.float32)
    out3 = jax.block_until_ready(pos_embedding_learned_mlp(xyz3, params))
    ref3 = _reference(xyz3, params)
    assert out3.shape == (2, 64, num_pos_feats), out3.shape
    assert jnp.allclose(out3, ref3, atol=1e-3, rtol=1e-3), (
        float(jnp.max(jnp.abs(out3 - ref3))))

    # (B, V, H, W, dim) case
    xyz5 = jax.random.normal(k_x2, (1, 2, 4, 8, dim), dtype=jnp.float32)
    out5 = jax.block_until_ready(pos_embedding_learned_mlp(xyz5, params))
    ref5 = _reference(xyz5, params)
    assert out5.shape == (1, 2, 4, 8, num_pos_feats), out5.shape
    assert jnp.allclose(out5, ref5, atol=1e-3, rtol=1e-3), (
        float(jnp.max(jnp.abs(out5 - ref5))))

    # multi-step grid with a partial (masked) last block: M=200, tile_m=64
    xyzp = jax.random.normal(k_x3, (2, 100, dim), dtype=jnp.float32)
    outp = jax.block_until_ready(
        pos_embedding_learned_mlp(xyzp, params, tile_m=64))
    refp = _reference(xyzp, params)
    assert outp.shape == (2, 100, num_pos_feats), outp.shape
    assert jnp.allclose(outp, refp, atol=1e-3, rtol=1e-3), (
        float(jnp.max(jnp.abs(outp - refp))))

    print("KERNEL_OK")
</pallas_src>

<mosaic_0001>
module attributes {stable_mosaic.version = 11 : i64} {
  func.func @_pos_mlp_kernel(%arg0: i32, %arg1: memref<128x3xf32, #tpu.memory_space<vmem>>, %arg2: memref<3x384xf32, #tpu.memory_space<vmem>>, %arg3: memref<1x384xf32, #tpu.memory_space<vmem>>, %arg4: memref<1x384xf32, #tpu.memory_space<vmem>>, %arg5: memref<1x384xf32, #tpu.memory_space<vmem>>, %arg6: memref<384x288xf32, #tpu.memory_space<vmem>>, %arg7: memref<1x288xf32, #tpu.memory_space<vmem>>, %arg8: memref<128x288xf32, #tpu.memory_space<vmem>>) attributes {dimension_semantics = [#tpu.dimension_semantics<parallel>], iteration_bounds = array<i64: 1>, scalar_prefetch = 0 : i64, scratch_operands = 0 : i64, tpu.core_type = #tpu.core_type<tc>, window_params = [{transform_indices = @transform_0, window_bounds = array<i64: 128, 3>}, {pipeline_mode = #tpu.pipeline_mode<synchronous>, transform_indices = @transform_1, window_bounds = array<i64: 3, 384>}, {pipeline_mode = #tpu.pipeline_mode<synchronous>, transform_indices = @transform_2, window_bounds = array<i64: 1, 384>}, {pipeline_mode = #tpu.pipeline_mode<synchronous>, transform_indices = @transform_3, window_bounds = array<i64: 1, 384>}, {pipeline_mode = #tpu.pipeline_mode<synchronous>, transform_indices = @transform_4, window_bounds = array<i64: 1, 384>}, {pipeline_mode = #tpu.pipeline_mode<synchronous>, transform_indices = @transform_5, window_bounds = array<i64: 384, 288>}, {pipeline_mode = #tpu.pipeline_mode<synchronous>, transform_indices = @transform_6, window_bounds = array<i64: 1, 288>}, {transform_indices = @transform_7, window_bounds = array<i64: 128, 288>}]} {
    %c0 = arith.constant 0 : index
    %c0_0 = arith.constant 0 : index
    %0 = vector.load %arg3[%c0, %c0_0] : memref<1x384xf32, #tpu.memory_space<vmem>>, vector<1x384xf32>
    %c0_1 = arith.constant 0 : index
    %c0_2 = arith.constant 0 : index
    %1 = vector.load %arg1[%c0_1, %c0_2] : memref<128x3xf32, #tpu.memory_space<vmem>>, vector<128x3xf32>
    %c0_3 = arith.constant 0 : index
    %c0_4 = arith.constant 0 : index
    %2 = vector.load %arg2[%c0_3, %c0_4] : memref<3x384xf32, #tpu.memory_space<vmem>>, vector<3x384xf32>
    %3 = vector.extract_strided_slice %1 {offsets = [0, 0], sizes = [128, 1], strides = [1, 1]} : vector<128x3xf32> to vector<128x1xf32>
    %4 = vector.extract_strided_slice %2 {offsets = [0, 0], sizes = [1, 384], strides = [1, 1]} : vector<3x384xf32> to vector<1x384xf32>
    %5 = vector.broadcast %3 : vector<128x1xf32> to vector<128x384xf32>
    %6 = vector.broadcast %4 : vector<1x384xf32> to vector<128x384xf32>
    %7 = arith.mulf %5, %6 : vector<128x384xf32>
    %8 = vector.broadcast %0 : vector<1x384xf32> to vector<128x384xf32>
    %9 = arith.addf %8, %7 : vector<128x384xf32>
    %10 = vector.extract_strided_slice %1 {offsets = [0, 1], sizes = [128, 1], strides = [1, 1]} : vector<128x3xf32> to vector<128x1xf32>
    %11 = vector.extract_strided_slice %2 {offsets = [1, 0], sizes = [1, 384], strides = [1, 1]} : vector<3x384xf32> to vector<1x384xf32>
    %12 = vector.broadcast %10 : vector<128x1xf32> to vector<128x384xf32>
    %13 = vector.broadcast %11 : vector<1x384xf32> to vector<128x384xf32>
    %14 = arith.mulf %12, %13 : vector<128x384xf32>
    %15 = arith.addf %9, %14 : vector<128x384xf32>
    %16 = vector.extract_strided_slice %1 {offsets = [0, 2], sizes = [128, 1], strides = [1, 1]} : vector<128x3xf32> to vector<128x1xf32>
    %17 = vector.extract_strided_slice %2 {offsets = [2, 0], sizes = [1, 384], strides = [1, 1]} : vector<3x384xf32> to vector<1x384xf32>
    %18 = vector.broadcast %16 : vector<128x1xf32> to vector<128x384xf32>
    %19 = vector.broadcast %17 : vector<1x384xf32> to vector<128x384xf32>
    %20 = arith.mulf %18, %19 : vector<128x384xf32>
    %21 = arith.addf %15, %20 : vector<128x384xf32>
    %cst = arith.constant dense<0.000000e+00> : vector<128xf32>
    %22 = vector.multi_reduction <add>, %21, %cst [1] : vector<128x384xf32> to vector<128xf32>
    %23 = vector.shape_cast %22 : vector<128xf32> to vector<128x1xf32>
    %24 = arith.mulf %21, %21 : vector<128x384xf32>
    %cst_5 = arith.constant dense<0.000000e+00> : vector<128xf32>
    %25 = vector.multi_reduction <add>, %24, %cst_5 [1] : vector<128x384xf32> to vector<128xf32>
    %26 = vector.shape_cast %25 : vector<128xf32> to vector<128x1xf32>
    %cst_6 = arith.constant 0.00347222225 : f32
    %27 = vector.broadcast %cst_6 : f32 to vector<128x1xf32>
    %28 = arith.mulf %23, %27 : vector<128x1xf32>
    %cst_7 = arith.constant 0.00347222225 : f32
    %29 = vector.broadcast %cst_7 : f32 to vector<128x1xf32>
    %30 = arith.mulf %26, %29 : vector<128x1xf32>
    %31 = arith.mulf %28, %28 : vector<128x1xf32>
    %32 = arith.subf %30, %31 : vector<128x1xf32>
    %cst_8 = arith.constant 0.000000e+00 : f32
    %33 = vector.broadcast %cst_8 : f32 to vector<128x1xf32>
    %34 = arith.maximumf %32, %33 : vector<128x1xf32>
    %cst_9 = arith.constant 9.99999974E-6 : f32
    %35 = vector.broadcast %cst_9 : f32 to vector<128x1xf32>
    %36 = arith.addf %34, %35 : vector<128x1xf32>
    %37 = math.rsqrt %36 : vector<128x1xf32>
    %38 = vector.broadcast %28 : vector<128x1xf32> to vector<128x384xf32>
    %39 = arith.subf %21, %38 : vector<128x384xf32>
    %40 = vector.broadcast %37 : vector<128x1xf32> to vector<128x384xf32>
    %41 = arith.mulf %39, %40 : vector<128x384xf32>
    %c0_10 = arith.constant 0 : index
    %c0_11 = arith.constant 0 : index
    %42 = vector.load %arg4[%c0_10, %c0_11] : memref<1x384xf32, #tpu.memory_space<vmem>>, vector<1x384xf32>
    %43 = vector.broadcast %42 : vector<1x384xf32> to vector<128x384xf32>
    %44 = arith.mulf %41, %43 : vector<128x384xf32>
    %c0_12 = arith.constant 0 : index
    %c0_13 = arith.constant 0 : index
    %45 = vector.load %arg5[%c0_12, %c0_13] : memref<1x384xf32, #tpu.memory_space<vmem>>, vector<1x384xf32>
    %46 = vector.broadcast %45 : vector<1x384xf32> to vector<128x384xf32>
    %47 = arith.addf %44, %46 : vector<128x384xf32>
    %cst_14 = arith.constant 0.000000e+00 : f32
    %48 = vector.broadcast %cst_14 : f32 to vector<128x384xf32>
    %49 = arith.maximumf %47, %48 : vector<128x384xf32>
    %c0_15 = arith.constant 0 : index
    %c0_16 = arith.constant 0 : index
    %50 = vector.load %arg6[%c0_15, %c0_16] : memref<384x288xf32, #tpu.memory_space<vmem>>, vector<384x288xf32>
    %cst_17 = arith.constant dense<0.000000e+00> : vector<128x288xf32>
    %51 = tpu.matmul %49, %50, %cst_17 {dimension_numbers = #tpu.dot_dimension_numbers<[1], [0], [0], [1], [0, 0, 1, 1], [], []>} : vector<128x384xf32>, vector<384x288xf32>, vector<128x288xf32> -> vector<128x288xf32>
    %c0_18 = arith.constant 0 : index
    %c0_19 = arith.constant 0 : index
    %52 = vector.load %arg7[%c0_18, %c0_19] : memref<1x288xf32, #tpu.memory_space<vmem>>, vector<1x288xf32>
    %53 = vector.broadcast %52 : vector<1x288xf32> to vector<128x288xf32>
    %54 = arith.addf %51, %53 : vector<128x288xf32>
    %c0_20 = arith.constant 0 : index
    %c0_21 = arith.constant 0 : index
    %55 = vector.load %arg8[%c0_20, %c0_21] : memref<128x288xf32, #tpu.memory_space<vmem>>, vector<128x288xf32>
    tpu.vector_store %arg8[%c0_20, %c0_21], %54 {strides = array<i32>} : memref<128x288xf32, #tpu.memory_space<vmem>>, vector<128x288xf32>,
    return
  }
  func.func @transform_0(%arg0: i32) -> (i32, i32) {
    %c0_i32 = arith.constant 0 : i32
    %c0_i32_0 = arith.constant 0 : i32
    return %arg0, %c0_i32 : i32, i32
  }
  func.func @transform_1(%arg0: i32) -> (i32, i32) {
    %c0_i32 = arith.constant 0 : i32
    %c0_i32_0 = arith.constant 0 : i32
    %c0_i32_1 = arith.constant 0 : i32
    return %c0_i32, %c0_i32_0 : i32, i32
  }
  func.func @transform_2(%arg0: i32) -> (i32, i32) {
    %c0_i32 = arith.constant 0 : i32
    %c0_i32_0 = arith.constant 0 : i32
    %c0_i32_1 = arith.constant 0 : i32
    return %c0_i32, %c0_i32_0 : i32, i32
  }
  func.func @transform_3(%arg0: i32) -> (i32, i32) {
    %c0_i32 = arith.constant 0 : i32
    %c0_i32_0 = arith.constant 0 : i32
    %c0_i32_1 = arith.constant 0 : i32
    return %c0_i32, %c0_i32_0 : i32, i32
  }
  func.func @transform_4(%arg0: i32) -> (i32, i32) {
    %c0_i32 = arith.constant 0 : i32
    %c0_i32_0 = arith.constant 0 : i32
    %c0_i32_1 = arith.constant 0 : i32
    return %c0_i32, %c0_i32_0 : i32, i32
  }
  func.func @transform_5(%arg0: i32) -> (i32, i32) {
    %c0_i32 = arith.constant 0 : i32
    %c0_i32_0 = arith.constant 0 : i32
    %c0_i32_1 = arith.constant 0 : i32
    return %c0_i32, %c0_i32_0 : i32, i32
  }
  func.func @transform_6(%arg0: i32) -> (i32, i32) {
    %c0_i32 = arith.constant 0 : i32
    %c0_i32_0 = arith.constant 0 : i32
    %c0_i32_1 = arith.constant 0 : i32
    return %c0_i32, %c0_i32_0 : i32, i32
  }
  func.func @transform_7(%arg0: i32) -> (i32, i32) {
    %c0_i32 = arith.constant 0 : i32
    %c0_i32_0 = arith.constant 0 : i32
    return %arg0, %c0_i32 : i32, i32
  }
}

</mosaic_0001>

<llo_original>
// kernel: tpu_custom_call.1
$region0: #{tpu_custom_call.1}
  #allocation0 [shape = 'u32[]', space=smem, size = 0x4, offset = 0x4, fixed_abs, tag = 'smem constant byte address 0x4 - core index']
  #allocation1 [shape = 'u32[144,128]{1,0:T(1,128)}', space=vmem, size = 0x12000, scoped, tag = 'internal scratch']
  %s0 = inlined_call_operand.vmem [shape: f32[128,3], index: 0, kind: input, shape index: {}]
  %s1 = inlined_call_operand.vmem [shape: f32[3,384], index: 1, kind: input, shape index: {}]
  %s2 = inlined_call_operand.vmem [shape: f32[1,384], index: 2, kind: input, shape index: {}]
  %s3 = inlined_call_operand.vmem [shape: f32[1,384], index: 3, kind: input, shape index: {}]
  %s4 = inlined_call_operand.vmem [shape: f32[1,384], index: 4, kind: input, shape index: {}]
  %s5 = inlined_call_operand.vmem [shape: f32[384,288], index: 5, kind: input, shape index: {}]
  %s6 = inlined_call_operand.vmem [shape: f32[1,288], index: 6, kind: input, shape index: {}]
  %s7 = inlined_call_operand.vmem [shape: f32[128,288], index: 7, kind: output, shape index: {}]
  %s8 = sld [smem:[#allocation0]]
  $region38: #{tpu_custom_call.1} parent=0
    _
  %s10 = ssub.s32 1, %s8
  %s11 = scalar_select 0, %s10, %s8
  // Predicated region
  $region2: #{tpu_custom_call.1} parent=0 // pred_check
    _
  $region3: #{tpu_custom_call.1} parent=0 // pred_check_branch
    %13 = sbr.rel (0) target = $region5
  $region4: #{tpu_custom_call.1} parent=0 // pred_region
    _
  $region5: #{tpu_custom_call.1} parent=0 // pred_fallthru
    _
  // Predicated region
  $region6: #{tpu_custom_call.1} parent=0 // pred_check
    _
  $region7: #{tpu_custom_call.1} parent=0 // pred_check_branch
    %15 = sbr.rel (0) target = $region9
  $region8: #{tpu_custom_call.1} parent=0 // pred_region
    _
  $region9: #{tpu_custom_call.1} parent=0 // pred_fallthru
    _
  // Predicated region
  $region10: #{tpu_custom_call.1} parent=0 // pred_check
    _
  $region11: #{tpu_custom_call.1} parent=0 // pred_check_branch
    %17 = sbr.rel (0) target = $region13
  $region12: #{tpu_custom_call.1} parent=0 // pred_region
    _
  $region13: #{tpu_custom_call.1} parent=0 // pred_fallthru
    _
  // Predicated region
  $region14: #{tpu_custom_call.1} parent=0 // pred_check
    _
  $region15: #{tpu_custom_call.1} parent=0 // pred_check_branch
    %19 = sbr.rel (0) target = $region17
  $region16: #{tpu_custom_call.1} parent=0 // pred_region
    _
  $region17: #{tpu_custom_call.1} parent=0 // pred_fallthru
    _
  // Predicated region
  $region18: #{tpu_custom_call.1} parent=0 // pred_check
    _
  $region19: #{tpu_custom_call.1} parent=0 // pred_check_branch
    %21 = sbr.rel (0) target = $region21
  $region20: #{tpu_custom_call.1} parent=0 // pred_region
    _
  $region21: #{tpu_custom_call.1} parent=0 // pred_fallthru
    _
  // Predicated region
  $region22: #{tpu_custom_call.1} parent=0 // pred_check
    _
  $region23: #{tpu_custom_call.1} parent=0 // pred_check_branch
    %23 = sbr.rel (0) target = $region25
  $region24: #{tpu_custom_call.1} parent=0 // pred_region
    _
  $region25: #{tpu_custom_call.1} parent=0 // pred_fallthru
    _
  // Predicated region
  $region26: #{tpu_custom_call.1} parent=0 // pred_check
    _
  $region27: #{tpu_custom_call.1} parent=0 // pred_check_branch
    %25 = sbr.rel (0) target = $region29
  $region28: #{tpu_custom_call.1} parent=0 // pred_region
    _
  $region29: #{tpu_custom_call.1} parent=0 // pred_fallthru
    _
  %v26 = vld [vmem:[%s2] sm:$0x7]
  %v27 = vld [vmem:[%s0] sm:$0xff]
  %v28 = vld [vmem:[%s0 + $0x8] sm:$0xff]
  %v29 = vld [vmem:[%s0 + $0x10] sm:$0xff]
  %v30 = vld [vmem:[%s0 + $0x18] sm:$0xff]
  %v31 = vld [vmem:[%s0 + $0x20] sm:$0xff]
  %v32 = vld [vmem:[%s0 + $0x28] sm:$0xff]
  %v33 = vld [vmem:[%s0 + $0x30] sm:$0xff]
  %v34 = vld [vmem:[%s0 + $0x38] sm:$0xff]
  %v35 = vld [vmem:[%s0 + $0x40] sm:$0xff]
  %v36 = vld [vmem:[%s0 + $0x48] sm:$0xff]
  %v37 = vld [vmem:[%s0 + $0x50] sm:$0xff]
  %v38 = vld [vmem:[%s0 + $0x58] sm:$0xff]
  %v39 = vld [vmem:[%s0 + $0x60] sm:$0xff]
  %v40 = vld [vmem:[%s0 + $0x68] sm:$0xff]
  %v41 = vld [vmem:[%s0 + $0x70] sm:$0xff]
  %v42 = vld [vmem:[%s0 + $0x78] sm:$0xff]
  %v43 = vld [vmem:[%s1] sm:$0x77]
  %v44 = vld [vmem:[%s1 + $0x8] sm:$0x7]
  %46 = vset.pattern.permute.xlu0 0
  %47 = vperm.xlu0 %46, %v27
  %v48 = vpop.permute.xlu0 %47
  %51 = vset.pattern.permute.xlu0 0
  %52 = vperm.xlu0 %51, %v28
  %v53 = vpop.permute.xlu0 %52
  %56 = vset.pattern.permute.xlu0 0
  %57 = vperm.xlu0 %56, %v29
  %v58 = vpop.permute.xlu0 %57
  %61 = vset.pattern.permute.xlu0 0
  %62 = vperm.xlu0 %61, %v30
  %v63 = vpop.permute.xlu0 %62
  %66 = vset.pattern.permute.xlu0 0
  %67 = vperm.xlu0 %66, %v31
  %v68 = vpop.permute.xlu0 %67
  %71 = vset.pattern.permute.xlu0 0
  %72 = vperm.xlu0 %71, %v32
  %v73 = vpop.permute.xlu0 %72
  %76 = vset.pattern.permute.xlu0 0
  %77 = vperm.xlu0 %76, %v33
  %v78 = vpop.permute.xlu0 %77
  %81 = vset.pattern.permute.xlu0 0
  %82 = vperm.xlu0 %81, %v34
  %v83 = vpop.permute.xlu0 %82
  %86 = vset.pattern.permute.xlu0 0
  %87 = vperm.xlu0 %86, %v35
  %v88 = vpop.permute.xlu0 %87
  %91 = vset.pattern.permute.xlu0 0
  %92 = vperm.xlu0 %91, %v36
  %v93 = vpop.permute.xlu0 %92
  %96 = vset.pattern.permute.xlu0 0
  %97 = vperm.xlu0 %96, %v37
  %v98 = vpop.permute.xlu0 %97
  %101 = vset.pattern.permute.xlu0 0
  %102 = vperm.xlu0 %101, %v38
  %v103 = vpop.permute.xlu0 %102
  %106 = vset.pattern.permute.xlu0 0
  %107 = vperm.xlu0 %106, %v39
  %v108 = vpop.permute.xlu0 %107
  %111 = vset.pattern.permute.xlu0 0
  %112 = vperm.xlu0 %111, %v40
  %v113 = vpop.permute.xlu0 %112
  %116 = vset.pattern.permute.xlu0 0
  %117 = vperm.xlu0 %116, %v41
  %v118 = vpop.permute.xlu0 %117
  %121 = vset.pattern.permute.xlu0 0
  %122 = vperm.xlu0 %121, %v42
  %v123 = vpop.permute.xlu0 %122
  %v127 = vlaneseq
  %v128 = vshrl.u32 %v127, 7
  %v129 = vsub.s32 0, %v128
  %v130 = vrot.slane %v43, %v129
  %v131 = vlaneseq
  %v132 = vshrl.u32 %v131, 7
  %v133 = vsub.s32 4, %v132
  %v134 = vrot.slane %v43, %v133
  %v135 = vlaneseq
  %v136 = vshrl.u32 %v135, 7
  %v137 = vsub.s32 0, %v136
  %v138 = vrot.slane %v44, %v137
  %v142 = vlaneseq
  %v143 = vshrl.u32 %v142, 7
  %v144 = vsub.s32 0, %v143
  %v145 = vrot.slane %v130, %v144
  %v146 = vlaneseq
  %v147 = vshrl.u32 %v146, 7
  %v148 = vsub.s32 0, %v147
  %v149 = vrot.slane %v134, %v148
  %v150 = vlaneseq
  %v151 = vshrl.u32 %v150, 7
  %v152 = vsub.s32 0, %v151
  %v153 = vrot.slane %v138, %v152
  %v154 = vmul.f32 %v48, %v145
  %v155 = vmul.f32 %v48, %v149
  %v156 = vmul.f32 %v48, %v153
  %v157 = vmul.f32 %v53, %v145
  %v158 = vmul.f32 %v53, %v149
  %v159 = vmul.f32 %v53, %v153
  %v160 = vmul.f32 %v58, %v145
  %v161 = vmul.f32 %v58, %v149
  %v162 = vmul.f32 %v58, %v153
  %v163 = vmul.f32 %v63, %v145
  %v164 = vmul.f32 %v63, %v149
  %v165 = vmul.f32 %v63, %v153
  %v166 = vmul.f32 %v68, %v145
  %v167 = vmul.f32 %v68, %v149
  %v168 = vmul.f32 %v68, %v153
  %v169 = vmul.f32 %v73, %v145
  %v170 = vmul.f32 %v73, %v149
  %v171 = vmul.f32 %v73, %v153
  %v172 = vmul.f32 %v78, %v145
  %v173 = vmul.f32 %v78, %v149
  %v174 = vmul.f32 %v78, %v153
  %v175 = vmul.f32 %v83, %v145
  %v176 = vmul.f32 %v83, %v149
  %v177 = vmul.f32 %v83, %v153
  %v178 = vmul.f32 %v88, %v145
  %v179 = vmul.f32 %v88, %v149
  %v180 = vmul.f32 %v88, %v153
  %v181 = vmul.f32 %v93, %v145
  %v182 = vmul.f32 %v93, %v149
  %v183 = vmul.f32 %v93, %v153
  %v184 = vmul.f32 %v98, %v145
  %v185 = vmul.f32 %v98, %v149
  %v186 = vmul.f32 %v98, %v153
  %v187 = vmul.f32 %v103, %v145
  %v188 = vmul.f32 %v103, %v149
  %v189 = vmul.f32 %v103, %v153
  %v190 = vmul.f32 %v108, %v145
  %v191 = vmul.f32 %v108, %v149
  %v192 = vmul.f32 %v108, %v153
  %v193 = vmul.f32 %v113, %v145
  %v194 = vmul.f32 %v113, %v149
  %v195 = vmul.f32 %v113, %v153
  %v196 = vmul.f32 %v118, %v145
  %v197 = vmul.f32 %v118, %v149
  %v198 = vmul.f32 %v118, %v153
  %v199 = vmul.f32 %v123, %v145
  %v200 = vmul.f32 %v123, %v149
  %v201 = vmul.f32 %v123, %v153
  %v203 = vlaneseq
  %v204 = vshrl.u32 %v203, 7
  %v205 = vsub.s32 0, %v204
  %v206 = vrot.slane %v26, %v205
  %v207 = vlaneseq
  %v208 = vshrl.u32 %v207, 7
  %v209 = vsub.s32 1, %v208
  %v210 = vrot.slane %v26, %v209
  %v211 = vlaneseq
  %v212 = vshrl.u32 %v211, 7
  %v213 = vsub.s32 2, %v212
  %v214 = vrot.slane %v26, %v213
  %v218 = vadd.f32 %v206, %v154
  %v219 = vadd.f32 %v210, %v155
  %v220 = vadd.f32 %v214, %v156
  %v221 = vadd.f32 %v206, %v157
  %v222 = vadd.f32 %v210, %v158
  %v223 = vadd.f32 %v214, %v159
  %v224 = vadd.f32 %v206, %v160
  %v225 = vadd.f32 %v210, %v161
  %v226 = vadd.f32 %v214, %v162
  %v227 = vadd.f32 %v206, %v163
  %v228 = vadd.f32 %v210, %v164
  %v229 = vadd.f32 %v214, %v165
  %v230 = vadd.f32 %v206, %v166
  %v231 = vadd.f32 %v210, %v167
  %v232 = vadd.f32 %v214, %v168
  %v233 = vadd.f32 %v206, %v169
  %v234 = vadd.f32 %v210, %v170
  %v235 = vadd.f32 %v214, %v171
  %v236 = vadd.f32 %v206, %v172
  %v237 = vadd.f32 %v210, %v173
  %v238 = vadd.f32 %v214, %v174
  %v239 = vadd.f32 %v206, %v175
  %v240 = vadd.f32 %v210, %v176
  %v241 = vadd.f32 %v214, %v177
  %v242 = vadd.f32 %v206, %v178
  %v243 = vadd.f32 %v210, %v179
  %v244 = vadd.f32 %v214, %v180
  %v245 = vadd.f32 %v206, %v181
  %v246 = vadd.f32 %v210, %v182
  %v247 = vadd.f32 %v214, %v183
  %v248 = vadd.f32 %v206, %v184
  %v249 = vadd.f32 %v210, %v185
  %v250 = vadd.f32 %v214, %v186
  %v251 = vadd.f32 %v206, %v187
  %v252 = vadd.f32 %v210, %v188
  %v253 = vadd.f32 %v214, %v189
  %v254 = vadd.f32 %v206, %v190
  %v255 = vadd.f32 %v210, %v191
  %v256 = vadd.f32 %v214, %v192
  %v257 = vadd.f32 %v206, %v193
  %v258 = vadd.f32 %v210, %v194
  %v259 = vadd.f32 %v214, %v195
  %v260 = vadd.f32 %v206, %v196
  %v261 = vadd.f32 %v210, %v197
  %v262 = vadd.f32 %v214, %v198
  %v263 = vadd.f32 %v206, %v199
  %v264 = vadd.f32 %v210, %v200
  %v265 = vadd.f32 %v214, %v201
  %266 = vset.pattern.permute.xlu0 1
  %267 = vperm.xlu0 %266, %v27
  %v268 = vpop.permute.xlu0 %267
  %270 = vset.pattern.permute.xlu0 1
  %271 = vperm.xlu0 %270, %v28
  %v272 = vpop.permute.xlu0 %271
  %274 = vset.pattern.permute.xlu0 1
  %275 = vperm.xlu0 %274, %v29
  %v276 = vpop.permute.xlu0 %275
  %278 = vset.pattern.permute.xlu0 1
  %279 = vperm.xlu0 %278, %v30
  %v280 = vpop.permute.xlu0 %279
  %282 = vset.pattern.permute.xlu0 1
  %283 = vperm.xlu0 %282, %v31
  %v284 = vpop.permute.xlu0 %283
  %286 = vset.pattern.permute.xlu0 1
  %287 = vperm.xlu0 %286, %v32
  %v288 = vpop.permute.xlu0 %287
  %290 = vset.pattern.permute.xlu0 1
  %291 = vperm.xlu0 %290, %v33
  %v292 = vpop.permute.xlu0 %291
  %294 = vset.pattern.permute.xlu0 1
  %295 = vperm.xlu0 %294, %v34
  %v296 = vpop.permute.xlu0 %295
  %298 = vset.pattern.permute.xlu0 1
  %299 = vperm.xlu0 %298, %v35
  %v300 = vpop.permute.xlu0 %299
  %302 = vset.pattern.permute.xlu0 1
  %303 = vperm.xlu0 %302, %v36
  %v304 = vpop.permute.xlu0 %303
  %306 = vset.pattern.permute.xlu0 1
  %307 = vperm.xlu0 %306, %v37
  %v308 = vpop.permute.xlu0 %307
  %310 = vset.pattern.permute.xlu0 1
  %311 = vperm.xlu0 %310, %v38
  %v312 = vpop.permute.xlu0 %311
  %314 = vset.pattern.permute.xlu0 1
  %315 = vperm.xlu0 %314, %v39
  %v316 = vpop.permute.xlu0 %315
  %318 = vset.pattern.permute.xlu0 1
  %319 = vperm.xlu0 %318, %v40
  %v320 = vpop.permute.xlu0 %319
  %322 = vset.pattern.permute.xlu0 1
  %323 = vperm.xlu0 %322, %v41
  %v324 = vpop.permute.xlu0 %323
  %326 = vset.pattern.permute.xlu0 1
  %327 = vperm.xlu0 %326, %v42
  %v328 = vpop.permute.xlu0 %327
  %v330 = vlaneseq
  %v331 = vshrl.u32 %v330, 7
  %v332 = vsub.s32 1, %v331
  %v333 = vrot.slane %v43, %v332
  %v334 = vlaneseq
  %v335 = vshrl.u32 %v334, 7
  %v336 = vsub.s32 5, %v335
  %v337 = vrot.slane %v43, %v336
  %v338 = vlaneseq
  %v339 = vshrl.u32 %v338, 7
  %v340 = vsub.s32 1, %v339
  %v341 = vrot.slane %v44, %v340
  %v345 = vlaneseq
  %v346 = vshrl.u32 %v345, 7
  %v347 = vsub.s32 1, %v346
  %v348 = vrot.slane %v333, %v347
  %v349 = vlaneseq
  %v350 = vshrl.u32 %v349, 7
  %v351 = vsub.s32 1, %v350
  %v352 = vrot.slane %v337, %v351
  %v353 = vlaneseq
  %v354 = vshrl.u32 %v353, 7
  %v355 = vsub.s32 1, %v354
  %v356 = vrot.slane %v341, %v355
  %v357 = vmul.f32 %v268, %v348
  %v358 = vmul.f32 %v268, %v352
  %v359 = vmul.f32 %v268, %v356
  %v360 = vmul.f32 %v272, %v348
  %v361 = vmul.f32 %v272, %v352
  %v362 = vmul.f32 %v272, %v356
  %v363 = vmul.f32 %v276, %v348
  %v364 = vmul.f32 %v276, %v352
  %v365 = vmul.f32 %v276, %v356
  %v366 = vmul.f32 %v280, %v348
  %v367 = vmul.f32 %v280, %v352
  %v368 = vmul.f32 %v280, %v356
  %v369 = vmul.f32 %v284, %v348
  %v370 = vmul.f32 %v284, %v352
  %v371 = vmul.f32 %v284, %v356
  %v372 = vmul.f32 %v288, %v348
  %v373 = vmul.f32 %v288, %v352
  %v374 = vmul.f32 %v288, %v356
  %v375 = vmul.f32 %v292, %v348
  %v376 = vmul.f32 %v292, %v352
  %v377 = vmul.f32 %v292, %v356
  %v378 = vmul.f32 %v296, %v348
  %v379 = vmul.f32 %v296, %v352
  %v380 = vmul.f32 %v296, %v356
  %v381 = vmul.f32 %v300, %v348
  %v382 = vmul.f32 %v300, %v352
  %v383 = vmul.f32 %v300, %v356
  %v384 = vmul.f32 %v304, %v348
  %v385 = vmul.f32 %v304, %v352
  %v386 = vmul.f32 %v304, %v356
  %v387 = vmul.f32 %v308, %v348
  %v388 = vmul.f32 %v308, %v352
  %v389 = vmul.f32 %v308, %v356
  %v390 = vmul.f32 %v312, %v348
  %v391 = vmul.f32 %v312, %v352
  %v392 = vmul.f32 %v312, %v356
  %v393 = vmul.f32 %v316, %v348
  %v394 = vmul.f32 %v316, %v352
  %v395 = vmul.f32 %v316, %v356
  %v396 = vmul.f32 %v320, %v348
  %v397 = vmul.f32 %v320, %v352
  %v398 = vmul.f32 %v320, %v356
  %v399 = vmul.f32 %v324, %v348
  %v400 = vmul.f32 %v324, %v352
  %v401 = vmul.f32 %v324, %v356
  %v402 = vmul.f32 %v328, %v348
  %v403 = vmul.f32 %v328, %v352
  %v404 = vmul.f32 %v328, %v356
  %v405 = vadd.f32 %v218, %v357
  %v406 = vadd.f32 %v219, %v358
  %v407 = vadd.f32 %v220, %v359
  %v408 = vadd.f32 %v221, %v360
  %v409 = vadd.f32 %v222, %v361
  %v410 = vadd.f32 %v223, %v362
  %v411 = vadd.f32 %v224, %v363
  %v412 = vadd.f32 %v225, %v364
  %v413 = vadd.f32 %v226, %v365
  %v414 = vadd.f32 %v227, %v366
  %v415 = vadd.f32 %v228, %v367
  %v416 = vadd.f32 %v229, %v368
  %v417 = vadd.f32 %v230, %v369
  %v418 = vadd.f32 %v231, %v370
  %v419 = vadd.f32 %v232, %v371
  %v420 = vadd.f32 %v233, %v372
  %v421 = vadd.f32 %v234, %v373
  %v422 = vadd.f32 %v235, %v374
  %v423 = vadd.f32 %v236, %v375
  %v424 = vadd.f32 %v237, %v376
  %v425 = vadd.f32 %v238, %v377
  %v426 = vadd.f32 %v239, %v378
  %v427 = vadd.f32 %v240, %v379
  %v428 = vadd.f32 %v241, %v380
  %v429 = vadd.f32 %v242, %v381
  %v430 = vadd.f32 %v243, %v382
  %v431 = vadd.f32 %v244, %v383
  %v432 = vadd.f32 %v245, %v384
  %v433 = vadd.f32 %v246, %v385
  %v434 = vadd.f32 %v247, %v386
  %v435 = vadd.f32 %v248, %v387
  %v436 = vadd.f32 %v249, %v388
  %v437 = vadd.f32 %v250, %v389
  %v438 = vadd.f32 %v251, %v390
  %v439 = vadd.f32 %v252, %v391
  %v440 = vadd.f32 %v253, %v392
  %v441 = vadd.f32 %v254, %v393
  %v442 = vadd.f32 %v255, %v394
  %v443 = vadd.f32 %v256, %v395
  %v444 = vadd.f32 %v257, %v396
  %v445 = vadd.f32 %v258, %v397
  %v446 = vadd.f32 %v259, %v398
  %v447 = vadd.f32 %v260, %v399
  %v448 = vadd.f32 %v261, %v400
  %v449 = vadd.f32 %v262, %v401
  %v450 = vadd.f32 %v263, %v402
  %v451 = vadd.f32 %v264, %v403
  %v452 = vadd.f32 %v265, %v404
  %453 = vset.pattern.permute.xlu0 2
  %454 = vperm.xlu0 %453, %v27
  %v455 = vpop.permute.xlu0 %454
  %457 = vset.pattern.permute.xlu0 2
  %458 = vperm.xlu0 %457, %v28
  %v459 = vpop.permute.xlu0 %458
  %461 = vset.pattern.permute.xlu0 2
  %462 = vperm.xlu0 %461, %v29
  %v463 = vpop.permute.xlu0 %462
  %465 = vset.pattern.permute.xlu0 2
  %466 = vperm.xlu0 %465, %v30
  %v467 = vpop.permute.xlu0 %466
  %469 = vset.pattern.permute.xlu0 2
  %470 = vperm.xlu0 %469, %v31
  %v471 = vpop.permute.xlu0 %470
  %473 = vset.pattern.permute.xlu0 2
  %474 = vperm.xlu0 %473, %v32
  %v475 = vpop.permute.xlu0 %474
  %477 = vset.pattern.permute.xlu0 2
  %478 = vperm.xlu0 %477, %v33
  %v479 = vpop.permute.xlu0 %478
  %481 = vset.pattern.permute.xlu0 2
  %482 = vperm.xlu0 %481, %v34
  %v483 = vpop.permute.xlu0 %482
  %485 = vset.pattern.permute.xlu0 2
  %486 = vperm.xlu0 %485, %v35
  %v487 = vpop.permute.xlu0 %486
  %489 = vset.pattern.permute.xlu0 2
  %490 = vperm.xlu0 %489, %v36
  %v491 = vpop.permute.xlu0 %490
  %493 = vset.pattern.permute.xlu0 2
  %494 = vperm.xlu0 %493, %v37
  %v495 = vpop.permute.xlu0 %494
  %497 = vset.pattern.permute.xlu0 2
  %498 = vperm.xlu0 %497, %v38
  %v499 = vpop.permute.xlu0 %498
  %501 = vset.pattern.permute.xlu0 2
  %502 = vperm.xlu0 %501, %v39
  %v503 = vpop.permute.xlu0 %502
  %505 = vset.pattern.permute.xlu0 2
  %506 = vperm.xlu0 %505, %v40
  %v507 = vpop.permute.xlu0 %506
  %509 = vset.pattern.permute.xlu0 2
  %510 = vperm.xlu0 %509, %v41
  %v511 = vpop.permute.xlu0 %510
  %513 = vset.pattern.permute.xlu0 2
  %514 = vperm.xlu0 %513, %v42
  %v515 = vpop.permute.xlu0 %514
  %v517 = vlaneseq
  %v518 = vshrl.u32 %v517, 7
  %v519 = vsub.s32 2, %v518
  %v520 = vrot.slane %v43, %v519
  %v521 = vlaneseq
  %v522 = vshrl.u32 %v521, 7
  %v523 = vsub.s32 6, %v522
  %v524 = vrot.slane %v43, %v523
  %v525 = vlaneseq
  %v526 = vshrl.u32 %v525, 7
  %v527 = vsub.s32 2, %v526
  %v528 = vrot.slane %v44, %v527
  %v532 = vlaneseq
  %v533 = vshrl.u32 %v532, 7
  %v534 = vsub.s32 2, %v533
  %v535 = vrot.slane %v520, %v534
  %v536 = vlaneseq
  %v537 = vshrl.u32 %v536, 7
  %v538 = vsub.s32 2, %v537
  %v539 = vrot.slane %v524, %v538
  %v540 = vlaneseq
  %v541 = vshrl.u32 %v540, 7
  %v542 = vsub.s32 2, %v541
  %v543 = vrot.slane %v528, %v542
  %v544 = vmul.f32 %v455, %v535
  %v545 = vmul.f32 %v455, %v539
  %v546 = vmul.f32 %v455, %v543
  %v547 = vmul.f32 %v459, %v535
  %v548 = vmul.f32 %v459, %v539
  %v549 = vmul.f32 %v459, %v543
  %v550 = vmul.f32 %v463, %v535
  %v551 = vmul.f32 %v463, %v539
  %v552 = vmul.f32 %v463, %v543
  %v553 = vmul.f32 %v467, %v535
  %v554 = vmul.f32 %v467, %v539
  %v555 = vmul.f32 %v467, %v543
  %v556 = vmul.f32 %v471, %v535
  %v557 = vmul.f32 %v471, %v539
  %v558 = vmul.f32 %v471, %v543
  %v559 = vmul.f32 %v475, %v535
  %v560 = vmul.f32 %v475, %v539
  %v561 = vmul.f32 %v475, %v543
  %v562 = vmul.f32 %v479, %v535
  %v563 = vmul.f32 %v479, %v539
  %v564 = vmul.f32 %v479, %v543
  %v565 = vmul.f32 %v483, %v535
  %v566 = vmul.f32 %v483, %v539
  %v567 = vmul.f32 %v483, %v543
  %v568 = vmul.f32 %v487, %v535
  %v569 = vmul.f32 %v487, %v539
  %v570 = vmul.f32 %v487, %v543
  %v571 = vmul.f32 %v491, %v535
  %v572 = vmul.f32 %v491, %v539
  %v573 = vmul.f32 %v491, %v543
  %v574 = vmul.f32 %v495, %v535
  %v575 = vmul.f32 %v495, %v539
  %v576 = vmul.f32 %v495, %v543
  %v577 = vmul.f32 %v499, %v535
  %v578 = vmul.f32 %v499, %v539
  %v579 = vmul.f32 %v499, %v543
  %v580 = vmul.f32 %v503, %v535
  %v581 = vmul.f32 %v503, %v539
  %v582 = vmul.f32 %v503, %v543
  %v583 = vmul.f32 %v507, %v535
  %v584 = vmul.f32 %v507, %v539
  %v585 = vmul.f32 %v507, %v543
  %v586 = vmul.f32 %v511, %v535
  %v587 = vmul.f32 %v511, %v539
  %v588 = vmul.f32 %v511, %v543
  %v589 = vmul.f32 %v515, %v535
  %v590 = vmul.f32 %v515, %v539
  %v591 = vmul.f32 %v515, %v543
  %v592 = vadd.f32 %v405, %v544
  %v593 = vadd.f32 %v406, %v545
  %v594 = vadd.f32 %v407, %v546
  %v595 = vadd.f32 %v408, %v547
  %v596 = vadd.f32 %v409, %v548
  %v597 = vadd.f32 %v410, %v549
  %v598 = vadd.f32 %v411, %v550
  %v599 = vadd.f32 %v412, %v551
  %v600 = vadd.f32 %v413, %v552
  %v601 = vadd.f32 %v414, %v553
  %v602 = vadd.f32 %v415, %v554
  %v603 = vadd.f32 %v416, %v555
  %v604 = vadd.f32 %v417, %v556
  %v605 = vadd.f32 %v418, %v557
  %v606 = vadd.f32 %v419, %v558
  %v607 = vadd.f32 %v420, %v559
  %v608 = vadd.f32 %v421, %v560
  %v609 = vadd.f32 %v422, %v561
  %v610 = vadd.f32 %v423, %v562
  %v611 = vadd.f32 %v424, %v563
  %v612 = vadd.f32 %v425, %v564
  %v613 = vadd.f32 %v426, %v565
  %v614 = vadd.f32 %v427, %v566
  %v615 = vadd.f32 %v428, %v567
  %v616 = vadd.f32 %v429, %v568
  %v617 = vadd.f32 %v430, %v569
  %v618 = vadd.f32 %v431, %v570
  %v619 = vadd.f32 %v432, %v571
  %v620 = vadd.f32 %v433, %v572
  %v621 = vadd.f32 %v434, %v573
  %v622 = vadd.f32 %v435, %v574
  %v623 = vadd.f32 %v436, %v575
  %v624 = vadd.f32 %v437, %v576
  %v625 = vadd.f32 %v438, %v577
  %v626 = vadd.f32 %v439, %v578
  %v627 = vadd.f32 %v440, %v579
  %v628 = vadd.f32 %v441, %v580
  %v629 = vadd.f32 %v442, %v581
  %v630 = vadd.f32 %v443, %v582
  %v631 = vadd.f32 %v444, %v583
  %v632 = vadd.f32 %v445, %v584
  %v633 = vadd.f32 %v446, %v585
  %v634 = vadd.f32 %v447, %v586
  %v635 = vadd.f32 %v448, %v587
  %v636 = vadd.f32 %v449, %v588
  %v637 = vadd.f32 %v450, %v589
  %v638 = vadd.f32 %v451, %v590
  %v639 = vadd.f32 %v452, %v591
  %v640 = vadd.f32 %v592, %v593
  %v641 = vadd.f32 %v640, %v594
  %642 = vadd.xlane.f32.xlu0 %v641
  %v643 = vpop.xlane.xlu0 %642
  %v644 = vadd.f32 %v595, %v596
  %v645 = vadd.f32 %v644, %v597
  %646 = vadd.xlane.f32.xlu0 %v645
  %v647 = vpop.xlane.xlu0 %646
  %v648 = vadd.f32 %v598, %v599
  %v649 = vadd.f32 %v648, %v600
  %650 = vadd.xlane.f32.xlu0 %v649
  %v651 = vpop.xlane.xlu0 %650
  %v652 = vadd.f32 %v601, %v602
  %v653 = vadd.f32 %v652, %v603
  %654 = vadd.xlane.f32.xlu0 %v653
  %v655 = vpop.xlane.xlu0 %654
  %v656 = vadd.f32 %v604, %v605
  %v657 = vadd.f32 %v656, %v606
  %658 = vadd.xlane.f32.xlu0 %v657
  %v659 = vpop.xlane.xlu0 %658
  %v660 = vadd.f32 %v607, %v608
  %v661 = vadd.f32 %v660, %v609
  %662 = vadd.xlane.f32.xlu0 %v661
  %v663 = vpop.xlane.xlu0 %662
  %v664 = vadd.f32 %v610, %v611
  %v665 = vadd.f32 %v664, %v612
  %666 = vadd.xlane.f32.xlu0 %v665
  %v667 = vpop.xlane.xlu0 %666
  %v668 = vadd.f32 %v613, %v614
  %v669 = vadd.f32 %v668, %v615
  %670 = vadd.xlane.f32.xlu0 %v669
  %v671 = vpop.xlane.xlu0 %670
  %v672 = vadd.f32 %v616, %v617
  %v673 = vadd.f32 %v672, %v618
  %674 = vadd.xlane.f32.xlu0 %v673
  %v675 = vpop.xlane.xlu0 %674
  %v676 = vadd.f32 %v619, %v620
  %v677 = vadd.f32 %v676, %v621
  %678 = vadd.xlane.f32.xlu0 %v677
  %v679 = vpop.xlane.xlu0 %678
  %v680 = vadd.f32 %v622, %v623
  %v681 = vadd.f32 %v680, %v624
  %682 = vadd.xlane.f32.xlu0 %v681
  %v683 = vpop.xlane.xlu0 %682
  %v684 = vadd.f32 %v625, %v626
  %v685 = vadd.f32 %v684, %v627
  %686 = vadd.xlane.f32.xlu0 %v685
  %v687 = vpop.xlane.xlu0 %686
  %v688 = vadd.f32 %v628, %v629
  %v689 = vadd.f32 %v688, %v630
  %690 = vadd.xlane.f32.xlu0 %v689
  %v691 = vpop.xlane.xlu0 %690
  %v692 = vadd.f32 %v631, %v632
  %v693 = vadd.f32 %v692, %v633
  %694 = vadd.xlane.f32.xlu0 %v693
  %v695 = vpop.xlane.xlu0 %694
  %v696 = vadd.f32 %v634, %v635
  %v697 = vadd.f32 %v696, %v636
  %698 = vadd.xlane.f32.xlu0 %v697
  %v699 = vpop.xlane.xlu0 %698
  %v700 = vadd.f32 %v637, %v638
  %v701 = vadd.f32 %v700, %v639
  %702 = vadd.xlane.f32.xlu0 %v701
  %v703 = vpop.xlane.xlu0 %702
  %v704 = vmul.f32 %v592, %v592
  %v705 = vmul.f32 %v593, %v593
  %v706 = vmul.f32 %v594, %v594
  %v707 = vmul.f32 %v595, %v595
  %v708 = vmul.f32 %v596, %v596
  %v709 = vmul.f32 %v597, %v597
  %v710 = vmul.f32 %v598, %v598
  %v711 = vmul.f32 %v599, %v599
  %v712 = vmul.f32 %v600, %v600
  %v713 = vmul.f32 %v601, %v601
  %v714 = vmul.f32 %v602, %v602
  %v715 = vmul.f32 %v603, %v603
  %v716 = vmul.f32 %v604, %v604
  %v717 = vmul.f32 %v605, %v605
  %v718 = vmul.f32 %v606, %v606
  %v719 = vmul.f32 %v607, %v607
  %v720 = vmul.f32 %v608, %v608
  %v721 = vmul.f32 %v609, %v609
  %v722 = vmul.f32 %v610, %v610
  %v723 = vmul.f32 %v611, %v611
  %v724 = vmul.f32 %v612, %v612
  %v725 = vmul.f32 %v613, %v613
  %v726 = vmul.f32 %v614, %v614
  %v727 = vmul.f32 %v615, %v615
  %v728 = vmul.f32 %v616, %v616
  %v729 = vmul.f32 %v617, %v617
  %v730 = vmul.f32 %v618, %v618
  %v731 = vmul.f32 %v619, %v619
  %v732 = vmul.f32 %v620, %v620
  %v733 = vmul.f32 %v621, %v621
  %v734 = vmul.f32 %v622, %v622
  %v735 = vmul.f32 %v623, %v623
  %v736 = vmul.f32 %v624, %v624
  %v737 = vmul.f32 %v625, %v625
  %v738 = vmul.f32 %v626, %v626
  %v739 = vmul.f32 %v627, %v627
  %v740 = vmul.f32 %v628, %v628
  %v741 = vmul.f32 %v629, %v629
  %v742 = vmul.f32 %v630, %v630
  %v743 = vmul.f32 %v631, %v631
  %v744 = vmul.f32 %v632, %v632
  %v745 = vmul.f32 %v633, %v633
  %v746 = vmul.f32 %v634, %v634
  %v747 = vmul.f32 %v635, %v635
  %v748 = vmul.f32 %v636, %v636
  %v749 = vmul.f32 %v637, %v637
  %v750 = vmul.f32 %v638, %v638
  %v751 = vmul.f32 %v639, %v639
  %v752 = vadd.f32 %v704, %v705
  %v753 = vadd.f32 %v752, %v706
  %754 = vadd.xlane.f32.xlu0 %v753
  %v755 = vpop.xlane.xlu0 %754
  %v756 = vadd.f32 %v707, %v708
  %v757 = vadd.f32 %v756, %v709
  %758 = vadd.xlane.f32.xlu0 %v757
  %v759 = vpop.xlane.xlu0 %758
  %v760 = vadd.f32 %v710, %v711
  %v761 = vadd.f32 %v760, %v712
  %762 = vadd.xlane.f32.xlu0 %v761
  %v763 = vpop.xlane.xlu0 %762
  %v764 = vadd.f32 %v713, %v714
  %v765 = vadd.f32 %v764, %v715
  %766 = vadd.xlane.f32.xlu0 %v765
  %v767 = vpop.xlane.xlu0 %766
  %v768 = vadd.f32 %v716, %v717
  %v769 = vadd.f32 %v768, %v718
  %770 = vadd.xlane.f32.xlu0 %v769
  %v771 = vpop.xlane.xlu0 %770
  %v772 = vadd.f32 %v719, %v720
  %v773 = vadd.f32 %v772, %v721
  %774 = vadd.xlane.f32.xlu0 %v773
  %v775 = vpop.xlane.xlu0 %774
  %v776 = vadd.f32 %v722, %v723
  %v777 = vadd.f32 %v776, %v724
  %778 = vadd.xlane.f32.xlu0 %v777
  %v779 = vpop.xlane.xlu0 %778
  %v780 = vadd.f32 %v725, %v726
  %v781 = vadd.f32 %v780, %v727
  %782 = vadd.xlane.f32.xlu0 %v781
  %v783 = vpop.xlane.xlu0 %782
  %v784 = vadd.f32 %v728, %v729
  %v785 = vadd.f32 %v784, %v730
  %786 = vadd.xlane.f32.xlu0 %v785
  %v787 = vpop.xlane.xlu0 %786
  %v788 = vadd.f32 %v731, %v732
  %v789 = vadd.f32 %v788, %v733
  %790 = vadd.xlane.f32.xlu0 %v789
  %v791 = vpop.xlane.xlu0 %790
  %v792 = vadd.f32 %v734, %v735
  %v793 = vadd.f32 %v792, %v736
  %794 = vadd.xlane.f32.xlu0 %v793
  %v795 = vpop.xlane.xlu0 %794
  %v796 = vadd.f32 %v737, %v738
  %v797 = vadd.f32 %v796, %v739
  %798 = vadd.xlane.f32.xlu0 %v797
  %v799 = vpop.xlane.xlu0 %798
  %v800 = vadd.f32 %v740, %v741
  %v801 = vadd.f32 %v800, %v742
  %802 = vadd.xlane.f32.xlu0 %v801
  %v803 = vpop.xlane.xlu0 %802
  %v804 = vadd.f32 %v743, %v744
  %v805 = vadd.f32 %v804, %v745
  %806 = vadd.xlane.f32.xlu0 %v805
  %v807 = vpop.xlane.xlu0 %806
  %v808 = vadd.f32 %v746, %v747
  %v809 = vadd.f32 %v808, %v748
  %810 = vadd.xlane.f32.xlu0 %v809
  %v811 = vpop.xlane.xlu0 %810
  %v812 = vadd.f32 %v749, %v750
  %v813 = vadd.f32 %v812, %v751
  %814 = vadd.xlane.f32.xlu0 %v813
  %v815 = vpop.xlane.xlu0 %814
  %v816 = vmul.f32 %v643, 0.0034722222
  %v817 = vmul.f32 %v647, 0.0034722222
  %v818 = vmul.f32 %v651, 0.0034722222
  %v819 = vmul.f32 %v655, 0.0034722222
  %v820 = vmul.f32 %v659, 0.0034722222
  %v821 = vmul.f32 %v663, 0.0034722222
  %v822 = vmul.f32 %v667, 0.0034722222
  %v823 = vmul.f32 %v671, 0.0034722222
  %v824 = vmul.f32 %v675, 0.0034722222
  %v825 = vmul.f32 %v679, 0.0034722222
  %v826 = vmul.f32 %v683, 0.0034722222
  %v827 = vmul.f32 %v687, 0.0034722222
  %v828 = vmul.f32 %v691, 0.0034722222
  %v829 = vmul.f32 %v695, 0.0034722222
  %v830 = vmul.f32 %v699, 0.0034722222
  %v831 = vmul.f32 %v703, 0.0034722222
  %v832 = vmul.f32 %v755, 0.0034722222
  %v833 = vmul.f32 %v759, 0.0034722222
  %v834 = vmul.f32 %v763, 0.0034722222
  %v835 = vmul.f32 %v767, 0.0034722222
  %v836 = vmul.f32 %v771, 0.0034722222
  %v837 = vmul.f32 %v775, 0.0034722222
  %v838 = vmul.f32 %v779, 0.0034722222
  %v839 = vmul.f32 %v783, 0.0034722222
  %v840 = vmul.f32 %v787, 0.0034722222
  %v841 = vmul.f32 %v791, 0.0034722222
  %v842 = vmul.f32 %v795, 0.0034722222
  %v843 = vmul.f32 %v799, 0.0034722222
  %v844 = vmul.f32 %v803, 0.0034722222
  %v845 = vmul.f32 %v807, 0.0034722222
  %v846 = vmul.f32 %v811, 0.0034722222
  %v847 = vmul.f32 %v815, 0.0034722222
  %v848 = vmul.f32 %v816, %v816
  %v849 = vmul.f32 %v817, %v817
  %v850 = vmul.f32 %v818, %v818
  %v851 = vmul.f32 %v819, %v819
  %v852 = vmul.f32 %v820, %v820
  %v853 = vmul.f32 %v821, %v821
  %v854 = vmul.f32 %v822, %v822
  %v855 = vmul.f32 %v823, %v823
  %v856 = vmul.f32 %v824, %v824
  %v857 = vmul.f32 %v825, %v825
  %v858 = vmul.f32 %v826, %v826
  %v859 = vmul.f32 %v827, %v827
  %v860 = vmul.f32 %v828, %v828
  %v861 = vmul.f32 %v829, %v829
  %v862 = vmul.f32 %v830, %v830
  %v863 = vmul.f32 %v831, %v831
  %v864 = vsub.f32 %v832, %v848
  %v865 = vsub.f32 %v833, %v849
  %v866 = vsub.f32 %v834, %v850
  %v867 = vsub.f32 %v835, %v851
  %v868 = vsub.f32 %v836, %v852
  %v869 = vsub.f32 %v837, %v853
  %v870 = vsub.f32 %v838, %v854
  %v871 = vsub.f32 %v839, %v855
  %v872 = vsub.f32 %v840, %v856
  %v873 = vsub.f32 %v841, %v857
  %v874 = vsub.f32 %v842, %v858
  %v875 = vsub.f32 %v843, %v859
  %v876 = vsub.f32 %v844, %v860
  %v877 = vsub.f32 %v845, %v861
  %v878 = vsub.f32 %v846, %v862
  %v879 = vsub.f32 %v847, %v863
  %v880 = vmax.f32 %v864, 0.0
  %v881 = vmax.f32 %v865, 0.0
  %v882 = vmax.f32 %v866, 0.0
  %v883 = vmax.f32 %v867, 0.0
  %v884 = vmax.f32 %v868, 0.0
  %v885 = vmax.f32 %v869, 0.0
  %v886 = vmax.f32 %v870, 0.0
  %v887 = vmax.f32 %v871, 0.0
  %v888 = vmax.f32 %v872, 0.0
  %v889 = vmax.f32 %v873, 0.0
  %v890 = vmax.f32 %v874, 0.0
  %v891 = vmax.f32 %v875, 0.0
  %v892 = vmax.f32 %v876, 0.0
  %v893 = vmax.f32 %v877, 0.0
  %v894 = vmax.f32 %v878, 0.0
  %v895 = vmax.f32 %v879, 0.0
  %v896 = vadd.f32 %v880, 1e-05
  %v897 = vadd.f32 %v881, 1e-05
  %v898 = vadd.f32 %v882, 1e-05
  %v899 = vadd.f32 %v883, 1e-05
  %v900 = vadd.f32 %v884, 1e-05
  %v901 = vadd.f32 %v885, 1e-05
  %v902 = vadd.f32 %v886, 1e-05
  %v903 = vadd.f32 %v887, 1e-05
  %v904 = vadd.f32 %v888, 1e-05
  %v905 = vadd.f32 %v889, 1e-05
  %v906 = vadd.f32 %v890, 1e-05
  %v907 = vadd.f32 %v891, 1e-05
  %v908 = vadd.f32 %v892, 1e-05
  %v909 = vadd.f32 %v893, 1e-05
  %v910 = vadd.f32 %v894, 1e-05
  %v911 = vadd.f32 %v895, 1e-05
  %v912 = vrsqrt.pop %v896
  %v913 = vrsqrt.pop %v897
  %v914 = vrsqrt.pop %v898
  %v915 = vrsqrt.pop %v899
  %v916 = vrsqrt.pop %v900
  %v917 = vrsqrt.pop %v901
  %v918 = vrsqrt.pop %v902
  %v919 = vrsqrt.pop %v903
  %v920 = vrsqrt.pop %v904
  %v921 = vrsqrt.pop %v905
  %v922 = vrsqrt.pop %v906
  %v923 = vrsqrt.pop %v907
  %v924 = vrsqrt.pop %v908
  %v925 = vrsqrt.pop %v909
  %v926 = vrsqrt.pop %v910
  %v927 = vrsqrt.pop %v911
  %v928 = vsub.f32 %v592, %v816
  %v929 = vsub.f32 %v593, %v816
  %v930 = vsub.f32 %v594, %v816
  %v931 = vsub.f32 %v595, %v817
  %v932 = vsub.f32 %v596, %v817
  %v933 = vsub.f32 %v597, %v817
  %v934 = vsub.f32 %v598, %v818
  %v935 = vsub.f32 %v599, %v818
  %v936 = vsub.f32 %v600, %v818
  %v937 = vsub.f32 %v601, %v819
  %v938 = vsub.f32 %v602, %v819
  %v939 = vsub.f32 %v603, %v819
  %v940 = vsub.f32 %v604, %v820
  %v941 = vsub.f32 %v605, %v820
  %v942 = vsub.f32 %v606, %v820
  %v943 = vsub.f32 %v607, %v821
  %v944 = vsub.f32 %v608, %v821
  %v945 = vsub.f32 %v609, %v821
  %v946 = vsub.f32 %v610, %v822
  %v947 = vsub.f32 %v611, %v822
  %v948 = vsub.f32 %v612, %v822
  %v949 = vsub.f32 %v613, %v823
  %v950 = vsub.f32 %v614, %v823
  %v951 = vsub.f32 %v615, %v823
  %v952 = vsub.f32 %v616, %v824
  %v953 = vsub.f32 %v617, %v824
  %v954 = vsub.f32 %v618, %v824
  %v955 = vsub.f32 %v619, %v825
  %v956 = vsub.f32 %v620, %v825
  %v957 = vsub.f32 %v621, %v825
  %v958 = vsub.f32 %v622, %v826
  %v959 = vsub.f32 %v623, %v826
  %v960 = vsub.f32 %v624, %v826
  %v961 = vsub.f32 %v625, %v827
  %v962 = vsub.f32 %v626, %v827
  %v963 = vsub.f32 %v627, %v827
  %v964 = vsub.f32 %v628, %v828
  %v965 = vsub.f32 %v629, %v828
  %v966 = vsub.f32 %v630, %v828
  %v967 = vsub.f32 %v631, %v829
  %v968 = vsub.f32 %v632, %v829
  %v969 = vsub.f32 %v633, %v829
  %v970 = vsub.f32 %v634, %v830
  %v971 = vsub.f32 %v635, %v830
  %v972 = vsub.f32 %v636, %v830
  %v973 = vsub.f32 %v637, %v831
  %v974 = vsub.f32 %v638, %v831
  %v975 = vsub.f32 %v639, %v831
  %v976 = vmul.f32 %v928, %v912
  %v977 = vmul.f32 %v929, %v912
  %v978 = vmul.f32 %v930, %v912
  %v979 = vmul.f32 %v931, %v913
  %v980 = vmul.f32 %v932, %v913
  %v981 = vmul.f32 %v933, %v913
  %v982 = vmul.f32 %v934, %v914
  %v983 = vmul.f32 %v935, %v914
  %v984 = vmul.f32 %v936, %v914
  %v985 = vmul.f32 %v937, %v915
  %v986 = vmul.f32 %v938, %v915
  %v987 = vmul.f32 %v939, %v915
  %v988 = vmul.f32 %v940, %v916
  %v989 = vmul.f32 %v941, %v916
  %v990 = vmul.f32 %v942, %v916
  %v991 = vmul.f32 %v943, %v917
  %v992 = vmul.f32 %v944, %v917
  %v993 = vmul.f32 %v945, %v917
  %v994 = vmul.f32 %v946, %v918
  %v995 = vmul.f32 %v947, %v918
  %v996 = vmul.f32 %v948, %v918
  %v997 = vmul.f32 %v949, %v919
  %v998 = vmul.f32 %v950, %v919
  %v999 = vmul.f32 %v951, %v919
  %v1000 = vmul.f32 %v952, %v920
  %v1001 = vmul.f32 %v953, %v920
  %v1002 = vmul.f32 %v954, %v920
  %v1003 = vmul.f32 %v955, %v921
  %v1004 = vmul.f32 %v956, %v921
  %v1005 = vmul.f32 %v957, %v921
  %v1006 = vmul.f32 %v958, %v922
  %v1007 = vmul.f32 %v959, %v922
  %v1008 = vmul.f32 %v960, %v922
  %v1009 = vmul.f32 %v961, %v923
  %v1010 = vmul.f32 %v962, %v923
  %v1011 = vmul.f32 %v963, %v923
  %v1012 = vmul.f32 %v964, %v924
  %v1013 = vmul.f32 %v965, %v924
  %v1014 = vmul.f32 %v966, %v924
  %v1015 = vmul.f32 %v967, %v925
  %v1016 = vmul.f32 %v968, %v925
  %v1017 = vmul.f32 %v969, %v925
  %v1018 = vmul.f32 %v970, %v926
  %v1019 = vmul.f32 %v971, %v926
  %v1020 = vmul.f32 %v972, %v926
  %v1021 = vmul.f32 %v973, %v927
  %v1022 = vmul.f32 %v974, %v927
  %v1023 = vmul.f32 %v975, %v927
  %v1024 = vld [vmem:[%s3] sm:$0x7]
  %v1026 = vlaneseq
  %v1027 = vshrl.u32 %v1026, 7
  %v1028 = vsub.s32 0, %v1027
  %v1029 = vrot.slane %v1024, %v1028
  %v1030 = vlaneseq
  %v1031 = vshrl.u32 %v1030, 7
  %v1032 = vsub.s32 1, %v1031
  %v1033 = vrot.slane %v1024, %v1032
  %v1034 = vlaneseq
  %v1035 = vshrl.u32 %v1034, 7
  %v1036 = vsub.s32 2, %v1035
  %v1037 = vrot.slane %v1024, %v1036
  %v1041 = vmul.f32 %v976, %v1029
  %v1042 = vmul.f32 %v977, %v1033
  %v1043 = vmul.f32 %v978, %v1037
  %v1044 = vmul.f32 %v979, %v1029
  %v1045 = vmul.f32 %v980, %v1033
  %v1046 = vmul.f32 %v981, %v1037
  %v1047 = vmul.f32 %v982, %v1029
  %v1048 = vmul.f32 %v983, %v1033
  %v1049 = vmul.f32 %v984, %v1037
  %v1050 = vmul.f32 %v985, %v1029
  %v1051 = vmul.f32 %v986, %v1033
  %v1052 = vmul.f32 %v987, %v1037
  %v1053 = vmul.f32 %v988, %v1029
  %v1054 = vmul.f32 %v989, %v1033
  %v1055 = vmul.f32 %v990, %v1037
  %v1056 = vmul.f32 %v991, %v1029
  %v1057 = vmul.f32 %v992, %v1033
  %v1058 = vmul.f32 %v993, %v1037
  %v1059 = vmul.f32 %v994, %v1029
  %v1060 = vmul.f32 %v995, %v1033
  %v1061 = vmul.f32 %v996, %v1037
  %v1062 = vmul.f32 %v997, %v1029
  %v1063 = vmul.f32 %v998, %v1033
  %v1064 = vmul.f32 %v999, %v1037
  %v1065 = vmul.f32 %v1000, %v1029
  %v1066 = vmul.f32 %v1001, %v1033
  %v1067 = vmul.f32 %v1002, %v1037
  %v1068 = vmul.f32 %v1003, %v1029
  %v1069 = vmul.f32 %v1004, %v1033
  %v1070 = vmul.f32 %v1005, %v1037
  %v1071 = vmul.f32 %v1006, %v1029
  %v1072 = vmul.f32 %v1007, %v1033
  %v1073 = vmul.f32 %v1008, %v1037
  %v1074 = vmul.f32 %v1009, %v1029
  %v1075 = vmul.f32 %v1010, %v1033
  %v1076 = vmul.f32 %v1011, %v1037
  %v1077 = vmul.f32 %v1012, %v1029
  %v1078 = vmul.f32 %v1013, %v1033
  %v1079 = vmul.f32 %v1014, %v1037
  %v1080 = vmul.f32 %v1015, %v1029
  %v1081 = vmul.f32 %v1016, %v1033
  %v1082 = vmul.f32 %v1017, %v1037
  %v1083 = vmul.f32 %v1018, %v1029
  %v1084 = vmul.f32 %v1019, %v1033
  %v1085 = vmul.f32 %v1020, %v1037
  %v1086 = vmul.f32 %v1021, %v1029
  %v1087 = vmul.f32 %v1022, %v1033
  %v1088 = vmul.f32 %v1023, %v1037
  %v1089 = vld [vmem:[%s4] sm:$0x7]
  %v1091 = vlaneseq
  %v1092 = vshrl.u32 %v1091, 7
  %v1093 = vsub.s32 0, %v1092
  %v1094 = vrot.slane %v1089, %v1093
  %v1095 = vlaneseq
  %v1096 = vshrl.u32 %v1095, 7
  %v1097 = vsub.s32 1, %v1096
  %v1098 = vrot.slane %v1089, %v1097
  %v1099 = vlaneseq
  %v1100 = vshrl.u32 %v1099, 7
  %v1101 = vsub.s32 2, %v1100
  %v1102 = vrot.slane %v1089, %v1101
  %v1106 = vadd.f32 %v1041, %v1094
  %v1107 = vadd.f32 %v1042, %v1098
  %v1108 = vadd.f32 %v1043, %v1102
  %v1109 = vadd.f32 %v1044, %v1094
  %v1110 = vadd.f32 %v1045, %v1098
  %v1111 = vadd.f32 %v1046, %v1102
  %v1112 = vadd.f32 %v1047, %v1094
  %v1113 = vadd.f32 %v1048, %v1098
  %v1114 = vadd.f32 %v1049, %v1102
  %v1115 = vadd.f32 %v1050, %v1094
  %v1116 = vadd.f32 %v1051, %v1098
  %v1117 = vadd.f32 %v1052, %v1102
  %v1118 = vadd.f32 %v1053, %v1094
  %v1119 = vadd.f32 %v1054, %v1098
  %v1120 = vadd.f32 %v1055, %v1102
  %v1121 = vadd.f32 %v1056, %v1094
  %v1122 = vadd.f32 %v1057, %v1098
  %v1123 = vadd.f32 %v1058, %v1102
  %v1124 = vadd.f32 %v1059, %v1094
  %v1125 = vadd.f32 %v1060, %v1098
  %v1126 = vadd.f32 %v1061, %v1102
  %v1127 = vadd.f32 %v1062, %v1094
  %v1128 = vadd.f32 %v1063, %v1098
  %v1129 = vadd.f32 %v1064, %v1102
  %v1130 = vadd.f32 %v1065, %v1094
  %v1131 = vadd.f32 %v1066, %v1098
  %v1132 = vadd.f32 %v1067, %v1102
  %v1133 = vadd.f32 %v1068, %v1094
  %v1134 = vadd.f32 %v1069, %v1098
  %v1135 = vadd.f32 %v1070, %v1102
  %v1136 = vadd.f32 %v1071, %v1094
  %v1137 = vadd.f32 %v1072, %v1098
  %v1138 = vadd.f32 %v1073, %v1102
  %v1139 = vadd.f32 %v1074, %v1094
  %v1140 = vadd.f32 %v1075, %v1098
  %v1141 = vadd.f32 %v1076, %v1102
  %v1142 = vadd.f32 %v1077, %v1094
  %v1143 = vadd.f32 %v1078, %v1098
  %v1144 = vadd.f32 %v1079, %v1102
  %v1145 = vadd.f32 %v1080, %v1094
  %v1146 = vadd.f32 %v1081, %v1098
  %v1147 = vadd.f32 %v1082, %v1102
  %v1148 = vadd.f32 %v1083, %v1094
  %v1149 = vadd.f32 %v1084, %v1098
  %v1150 = vadd.f32 %v1085, %v1102
  %v1151 = vadd.f32 %v1086, %v1094
  %v1152 = vadd.f32 %v1087, %v1098
  %v1153 = vadd.f32 %v1088, %v1102
  %v1154 = vmax.f32 %v1106, 0.0
  %v1155 = vmax.f32 %v1107, 0.0
  %v1156 = vmax.f32 %v1108, 0.0
  %v1157 = vmax.f32 %v1109, 0.0
  %v1158 = vmax.f32 %v1110, 0.0
  %v1159 = vmax.f32 %v1111, 0.0
  %v1160 = vmax.f32 %v1112, 0.0
  %v1161 = vmax.f32 %v1113, 0.0
  %v1162 = vmax.f32 %v1114, 0.0
  %v1163 = vmax.f32 %v1115, 0.0
  %v1164 = vmax.f32 %v1116, 0.0
  %v1165 = vmax.f32 %v1117, 0.0
  %v1166 = vmax.f32 %v1118, 0.0
  %v1167 = vmax.f32 %v1119, 0.0
  %v1168 = vmax.f32 %v1120, 0.0
  %v1169 = vmax.f32 %v1121, 0.0
  %v1170 = vmax.f32 %v1122, 0.0
  %v1171 = vmax.f32 %v1123, 0.0
  %v1172 = vmax.f32 %v1124, 0.0
  %v1173 = vmax.f32 %v1125, 0.0
  %v1174 = vmax.f32 %v1126, 0.0
  %v1175 = vmax.f32 %v1127, 0.0
  %v1176 = vmax.f32 %v1128, 0.0
  %v1177 = vmax.f32 %v1129, 0.0
  %v1178 = vmax.f32 %v1130, 0.0
  %v1179 = vmax.f32 %v1131, 0.0
  %v1180 = vmax.f32 %v1132, 0.0
  %v1181 = vmax.f32 %v1133, 0.0
  %v1182 = vmax.f32 %v1134, 0.0
  %v1183 = vmax.f32 %v1135, 0.0
  %v1184 = vmax.f32 %v1136, 0.0
  %v1185 = vmax.f32 %v1137, 0.0
  %v1186 = vmax.f32 %v1138, 0.0
  %v1187 = vmax.f32 %v1139, 0.0
  %v1188 = vmax.f32 %v1140, 0.0
  %v1189 = vmax.f32 %v1141, 0.0
  %v1190 = vmax.f32 %v1142, 0.0
  %v1191 = vmax.f32 %v1143, 0.0
  %v1192 = vmax.f32 %v1144, 0.0
  %v1193 = vmax.f32 %v1145, 0.0
  %v1194 = vmax.f32 %v1146, 0.0
  %v1195 = vmax.f32 %v1147, 0.0
  %v1196 = vmax.f32 %v1148, 0.0
  %v1197 = vmax.f32 %v1149, 0.0
  %v1198 = vmax.f32 %v1150, 0.0
  %v1199 = vmax.f32 %v1151, 0.0
  %v1200 = vmax.f32 %v1152, 0.0
  %v1201 = vmax.f32 %v1153, 0.0
  %v1202 = vld [vmem:[%s5] sm:$0xff]
  %v1203 = vld [vmem:[%s5 + $0x8] sm:$0xff]
  %v1204 = vld [vmem:[%s5 + $0x10] sm:$0xff]
  %v1205 = vld [vmem:[%s5 + $0x18] sm:$0xff]
  %v1206 = vld [vmem:[%s5 + $0x20] sm:$0xff]
  %v1207 = vld [vmem:[%s5 + $0x28] sm:$0xff]
  %v1208 = vld [vmem:[%s5 + $0x30] sm:$0xff]
  %v1209 = vld [vmem:[%s5 + $0x38] sm:$0xff]
  %v1210 = vld [vmem:[%s5 + $0x40] sm:$0xff]
  %v1211 = vld [vmem:[%s5 + $0x48] sm:$0xff]
  %v1212 = vld [vmem:[%s5 + $0x50] sm:$0xff]
  %v1213 = vld [vmem:[%s5 + $0x58] sm:$0xff]
  %v1214 = vld [vmem:[%s5 + $0x60] sm:$0xff]
  %v1215 = vld [vmem:[%s5 + $0x68] sm:$0xff]
  %v1216 = vld [vmem:[%s5 + $0x70] sm:$0xff]
  %v1217 = vld [vmem:[%s5 + $0x78] sm:$0xff]
  %v1218 = vld [vmem:[%s5 + $0x80] sm:$0xff]
  %v1219 = vld [vmem:[%s5 + $0x88] sm:$0xff]
  %v1220 = vld [vmem:[%s5 + $0x90] sm:$0xff]
  %v1221 = vld [vmem:[%s5 + $0x98] sm:$0xff]
  %v1222 = vld [vmem:[%s5 + $0xa0] sm:$0xff]
  %v1223 = vld [vmem:[%s5 + $0xa8] sm:$0xff]
  %v1224 = vld [vmem:[%s5 + $0xb0] sm:$0xff]
  %v1225 = vld [vmem:[%s5 + $0xb8] sm:$0xff]
  %v1226 = vld [vmem:[%s5 + $0xc0] sm:$0xff]
  %v1227 = vld [vmem:[%s5 + $0xc8] sm:$0xff]
  %v1228 = vld [vmem:[%s5 + $0xd0] sm:$0xff]
  %v1229 = vld [vmem:[%s5 + $0xd8] sm:$0xff]
  %v1230 = vld [vmem:[%s5 + $0xe0] sm:$0xff]
  %v1231 = vld [vmem:[%s5 + $0xe8] sm:$0xff]
  %v1232 = vld [vmem:[%s5 + $0xf0] sm:$0xff]
  %v1233 = vld [vmem:[%s5 + $0xf8] sm:$0xff]
  %v1234 = vld [vmem:[%s5 + $0x100] sm:$0xff]
  %v1235 = vld [vmem:[%s5 + $0x108] sm:$0xff]
  %v1236 = vld [vmem:[%s5 + $0x110] sm:$0xff]
  %v1237 = vld [vmem:[%s5 + $0x118] sm:$0xff]
  %v1238 = vld [vmem:[%s5 + $0x120] sm:$0xff]
  %v1239 = vld [vmem:[%s5 + $0x128] sm:$0xff]
  %v1240 = vld [vmem:[%s5 + $0x130] sm:$0xff]
  %v1241 = vld [vmem:[%s5 + $0x138] sm:$0xff]
  %v1242 = vld [vmem:[%s5 + $0x140] sm:$0xff]
  %v1243 = vld [vmem:[%s5 + $0x148] sm:$0xff]
  %v1244 = vld [vmem:[%s5 + $0x150] sm:$0xff]
  %v1245 = vld [vmem:[%s5 + $0x158] sm:$0xff]
  %v1246 = vld [vmem:[%s5 + $0x160] sm:$0xff]
  %v1247 = vld [vmem:[%s5 + $0x168] sm:$0xff]
  %v1248 = vld [vmem:[%s5 + $0x170] sm:$0xff]
  %v1249 = vld [vmem:[%s5 + $0x178] sm:$0xff]
  %v1250 = vld [vmem:[%s5 + $0x180] sm:$0xff]
  %v1251 = vld [vmem:[%s5 + $0x188] sm:$0xff]
  %v1252 = vld [vmem:[%s5 + $0x190] sm:$0xff]
  %v1253 = vld [vmem:[%s5 + $0x198] sm:$0xff]
  %v1254 = vld [vmem:[%s5 + $0x1a0] sm:$0xff]
  %v1255 = vld [vmem:[%s5 + $0x1a8] sm:$0xff]
  %v1256 = vld [vmem:[%s5 + $0x1b0] sm:$0xff]
  %v1257 = vld [vmem:[%s5 + $0x1b8] sm:$0xff]
  %v1258 = vld [vmem:[%s5 + $0x1c0] sm:$0xff]
  %v1259 = vld [vmem:[%s5 + $0x1c8] sm:$0xff]
  %v1260 = vld [vmem:[%s5 + $0x1d0] sm:$0xff]
  %v1261 = vld [vmem:[%s5 + $0x1d8] sm:$0xff]
  %v1262 = vld [vmem:[%s5 + $0x1e0] sm:$0xff]
  %v1263 = vld [vmem:[%s5 + $0x1e8] sm:$0xff]
  %v1264 = vld [vmem:[%s5 + $0x1f0] sm:$0xff]
  %v1265 = vld [vmem:[%s5 + $0x1f8] sm:$0xff]
  %v1266 = vld [vmem:[%s5 + $0x200] sm:$0xff]
  %v1267 = vld [vmem:[%s5 + $0x208] sm:$0xff]
  %v1268 = vld [vmem:[%s5 + $0x210] sm:$0xff]
  %v1269 = vld [vmem:[%s5 + $0x218] sm:$0xff]
  %v1270 = vld [vmem:[%s5 + $0x220] sm:$0xff]
  %v1271 = vld [vmem:[%s5 + $0x228] sm:$0xff]
  %v1272 = vld [vmem:[%s5 + $0x230] sm:$0xff]
  %v1273 = vld [vmem:[%s5 + $0x238] sm:$0xff]
  %v1274 = vld [vmem:[%s5 + $0x240] sm:$0xff]
  %v1275 = vld [vmem:[%s5 + $0x248] sm:$0xff]
  %v1276 = vld [vmem:[%s5 + $0x250] sm:$0xff]
  %v1277 = vld [vmem:[%s5 + $0x258] sm:$0xff]
  %v1278 = vld [vmem:[%s5 + $0x260] sm:$0xff]
  %v1279 = vld [vmem:[%s5 + $0x268] sm:$0xff]
  %v1280 = vld [vmem:[%s5 + $0x270] sm:$0xff]
  %v1281 = vld [vmem:[%s5 + $0x278] sm:$0xff]
  %v1282 = vld [vmem:[%s5 + $0x280] sm:$0xff]
  %v1283 = vld [vmem:[%s5 + $0x288] sm:$0xff]
  %v1284 = vld [vmem:[%s5 + $0x290] sm:$0xff]
  %v1285 = vld [vmem:[%s5 + $0x298] sm:$0xff]
  %v1286 = vld [vmem:[%s5 + $0x2a0] sm:$0xff]
  %v1287 = vld [vmem:[%s5 + $0x2a8] sm:$0xff]
  %v1288 = vld [vmem:[%s5 + $0x2b0] sm:$0xff]
  %v1289 = vld [vmem:[%s5 + $0x2b8] sm:$0xff]
  %v1290 = vld [vmem:[%s5 + $0x2c0] sm:$0xff]
  %v1291 = vld [vmem:[%s5 + $0x2c8] sm:$0xff]
  %v1292 = vld [vmem:[%s5 + $0x2d0] sm:$0xff]
  %v1293 = vld [vmem:[%s5 + $0x2d8] sm:$0xff]
  %v1294 = vld [vmem:[%s5 + $0x2e0] sm:$0xff]
  %v1295 = vld [vmem:[%s5 + $0x2e8] sm:$0xff]
  %v1296 = vld [vmem:[%s5 + $0x2f0] sm:$0xff]
  %v1297 = vld [vmem:[%s5 + $0x2f8] sm:$0xff]
  %v1298 = vld [vmem:[%s5 + $0x300] sm:$0xff]
  %v1299 = vld [vmem:[%s5 + $0x308] sm:$0xff]
  %v1300 = vld [vmem:[%s5 + $0x310] sm:$0xff]
  %v1301 = vld [vmem:[%s5 + $0x318] sm:$0xff]
  %v1302 = vld [vmem:[%s5 + $0x320] sm:$0xff]
  %v1303 = vld [vmem:[%s5 + $0x328] sm:$0xff]
  %v1304 = vld [vmem:[%s5 + $0x330] sm:$0xff]
  %v1305 = vld [vmem:[%s5 + $0x338] sm:$0xff]
  %v1306 = vld [vmem:[%s5 + $0x340] sm:$0xff]
  %v1307 = vld [vmem:[%s5 + $0x348] sm:$0xff]
  %v1308 = vld [vmem:[%s5 + $0x350] sm:$0xff]
  %v1309 = vld [vmem:[%s5 + $0x358] sm:$0xff]
  %v1310 = vld [vmem:[%s5 + $0x360] sm:$0xff]
  %v1311 = vld [vmem:[%s5 + $0x368] sm:$0xff]
  %v1312 = vld [vmem:[%s5 + $0x370] sm:$0xff]
  %v1313 = vld [vmem:[%s5 + $0x378] sm:$0xff]
  %v1314 = vld [vmem:[%s5 + $0x380] sm:$0xff]
  %v1315 = vld [vmem:[%s5 + $0x388] sm:$0xff]
  %v1316 = vld [vmem:[%s5 + $0x390] sm:$0xff]
  %v1317 = vld [vmem:[%s5 + $0x398] sm:$0xff]
  %v1318 = vld [vmem:[%s5 + $0x3a0] sm:$0xff]
  %v1319 = vld [vmem:[%s5 + $0x3a8] sm:$0xff]
  %v1320 = vld [vmem:[%s5 + $0x3b0] sm:$0xff]
  %v1321 = vld [vmem:[%s5 + $0x3b8] sm:$0xff]
  %v1322 = vld [vmem:[%s5 + $0x3c0] sm:$0xff]
  %v1323 = vld [vmem:[%s5 + $0x3c8] sm:$0xff]
  %v1324 = vld [vmem:[%s5 + $0x3d0] sm:$0xff]
  %v1325 = vld [vmem:[%s5 + $0x3d8] sm:$0xff]
  %v1326 = vld [vmem:[%s5 + $0x3e0] sm:$0xff]
  %v1327 = vld [vmem:[%s5 + $0x3e8] sm:$0xff]
  %v1328 = vld [vmem:[%s5 + $0x3f0] sm:$0xff]
  %v1329 = vld [vmem:[%s5 + $0x3f8] sm:$0xff]
  %v1330 = vld [vmem:[%s5 + $0x400] sm:$0xff]
  %v1331 = vld [vmem:[%s5 + $0x408] sm:$0xff]
  %v1332 = vld [vmem:[%s5 + $0x410] sm:$0xff]
  %v1333 = vld [vmem:[%s5 + $0x418] sm:$0xff]
  %v1334 = vld [vmem:[%s5 + $0x420] sm:$0xff]
  %v1335 = vld [vmem:[%s5 + $0x428] sm:$0xff]
  %v1336 = vld [vmem:[%s5 + $0x430] sm:$0xff]
  %v1337 = vld [vmem:[%s5 + $0x438] sm:$0xff]
  %v1338 = vld [vmem:[%s5 + $0x440] sm:$0xff]
  %v1339 = vld [vmem:[%s5 + $0x448] sm:$0xff]
  %v1340 = vld [vmem:[%s5 + $0x450] sm:$0xff]
  %v1341 = vld [vmem:[%s5 + $0x458] sm:$0xff]
  %v1342 = vld [vmem:[%s5 + $0x460] sm:$0xff]
  %v1343 = vld [vmem:[%s5 + $0x468] sm:$0xff]
  %v1344 = vld [vmem:[%s5 + $0x470] sm:$0xff]
  %v1345 = vld [vmem:[%s5 + $0x478] sm:$0xff]
  %v1346 = vld [vmem:[%s6] sm:$0x7]
  %v1348 = vlaneseq
  %v1349 = vshrl.u32 %v1348, 7
  %v1350 = vsub.s32 0, %v1349
  %v1351 = vrot.slane %v1346, %v1350
  %v1352 = vlaneseq
  %v1353 = vshrl.u32 %v1352, 7
  %v1354 = vsub.s32 1, %v1353
  %v1355 = vrot.slane %v1346, %v1354
  %v1356 = vlaneseq
  %v1357 = vshrl.u32 %v1356, 7
  %v1358 = vsub.s32 2, %v1357
  %v1359 = vrot.slane %v1346, %v1358
  %1363 = vmatprep.subr.mxu0 %v1203
  %1364 = vmatpush1.msra.mxu0 %v1202
  %1365 = vmatprep.subr.mxu0 %v1206
  %1366 = vmatpush1.msra.mxu0 %v1205
  %1367 = vmatprep.subr.mxu0 %v1209
  %1368 = vmatpush1.msra.mxu0 %v1208
  %1369 = vmatprep.subr.mxu0 %v1212
  %1370 = vmatpush1.msra.mxu0 %v1211
  %1371 = vmatprep.subr.mxu0 %v1215
  %1372 = vmatpush1.msra.mxu0 %v1214
  %1373 = vmatprep.subr.mxu0 %v1218
  %1374 = vmatpush1.msra.mxu0 %v1217
  %1375 = vmatprep.subr.mxu0 %v1221
  %1376 = vmatpush1.msra.mxu0 %v1220
  %1377 = vmatprep.subr.mxu0 %v1224
  %1378 = vmatpush1.msra.mxu0 %v1223
  %1379 = vmatprep.subr.mxu0 %v1227
  %1380 = vmatpush1.msra.mxu0 %v1226
  %1381 = vmatprep.subr.mxu0 %v1230
  %1382 = vmatpush1.msra.mxu0 %v1229
  %1383 = vmatprep.subr.mxu0 %v1233
  %1384 = vmatpush1.msra.mxu0 %v1232
  %1385 = vmatprep.subr.mxu0 %v1236
  %1386 = vmatpush1.msra.mxu0 %v1235
  %1387 = vmatprep.subr.mxu0 %v1239
  %1388 = vmatpush1.msra.mxu0 %v1238
  %1389 = vmatprep.subr.mxu0 %v1242
  %1390 = vmatpush1.msra.mxu0 %v1241
  %1391 = vmatprep.subr.mxu0 %v1245
  %1392 = vmatpush1.msra.mxu0 %v1244
  %1393 = vmatprep.subr.mxu0 %v1248
  %1394 = vmatpush1.msra.mxu0 %v1247
  %1395 = vmatprep.subr.mxu0 %v1251
  %1396 = vmatpush1.msra.mxu0 %v1250
  %1397 = vmatprep.subr.mxu0 %v1254
  %1398 = vmatpush1.msra.mxu0 %v1253
  %1399 = vmatprep.subr.mxu0 %v1257
  %1400 = vmatpush1.msra.mxu0 %v1256
  %1401 = vmatprep.subr.mxu0 %v1260
  %1402 = vmatpush1.msra.mxu0 %v1259
  %1403 = vmatprep.subr.mxu0 %v1263
  %1404 = vmatpush1.msra.mxu0 %v1262
  %1405 = vmatprep.subr.mxu0 %v1266
  %1406 = vmatpush1.msra.mxu0 %v1265
  %1407 = vmatprep.subr.mxu0 %v1269
  %1408 = vmatpush1.msra.mxu0 %v1268
  %1409 = vmatprep.subr.mxu0 %v1272
  %1410 = vmatpush1.msra.mxu0 %v1271
  %1411 = vmatprep.subr.mxu0 %v1275
  %1412 = vmatpush1.msra.mxu0 %v1274
  %1413 = vmatprep.subr.mxu0 %v1278
  %1414 = vmatpush1.msra.mxu0 %v1277
  %1415 = vmatprep.subr.mxu0 %v1281
  %1416 = vmatpush1.msra.mxu0 %v1280
  %1417 = vmatprep.subr.mxu0 %v1284
  %1418 = vmatpush1.msra.mxu0 %v1283
  %1419 = vmatprep.subr.mxu0 %v1287
  %1420 = vmatpush1.msra.mxu0 %v1286
  %1421 = vmatprep.subr.mxu0 %v1290
  %1422 = vmatpush1.msra.mxu0 %v1289
  %1423 = vmatprep.subr.mxu0 %v1293
  %1424 = vmatpush1.msra.mxu0 %v1292
  %1425 = vmatprep.subr.mxu0 %v1296
  %1426 = vmatpush1.msra.mxu0 %v1295
  %1427 = vmatprep.mubr.f32.mxu0 %v1155
  %1428 = vmatmul.mubr.f32.gmra.mrb[0].mxu0 %v1154
  %v1429 = vpop.f32.mrb[0].mxu0
  %v1430 = vadd.f32 %v1351, %v1429
  %v1431 = vpop.f32.mrb[0].mxu0
  %v1432 = vadd.f32 %v1355, %v1431
  %1433 = vmatprep.mubr.f32.mxu0 %v1158
  %1434 = vmatmul.mubr.f32.gmra.mrb[0].mxu0 %v1157
  %v1435 = vpop.f32.mrb[0].mxu0
  %v1436 = vadd.f32 %v1351, %v1435
  %v1437 = vpop.f32.mrb[0].mxu0
  %v1438 = vadd.f32 %v1355, %v1437
  %1439 = vmatprep.mubr.f32.mxu0 %v1161
  %1440 = vmatmul.mubr.f32.gmra.mrb[0].mxu0 %v1160
  %v1441 = vpop.f32.mrb[0].mxu0
  %v1442 = vadd.f32 %v1351, %v1441
  %v1443 = vpop.f32.mrb[0].mxu0
  %v1444 = vadd.f32 %v1355, %v1443
  %1445 = vmatprep.mubr.f32.mxu0 %v1164
  %1446 = vmatmul.mubr.f32.gmra.mrb[0].mxu0 %v1163
  %v1447 = vpop.f32.mrb[0].mxu0
  %v1448 = vadd.f32 %v1351, %v1447
  %v1449 = vpop.f32.mrb[0].mxu0
  %v1450 = vadd.f32 %v1355, %v1449
  %1451 = vmatprep.mubr.f32.mxu0 %v1167
  %1452 = vmatmul.mubr.f32.gmra.mrb[0].mxu0 %v1166
  %v1453 = vpop.f32.mrb[0].mxu0
  %v1454 = vadd.f32 %v1351, %v1453
  %v1455 = vpop.f32.mrb[0].mxu0
  %v1456 = vadd.f32 %v1355, %v1455
  %1457 = vmatprep.mubr.f32.mxu0 %v1170
  %1458 = vmatmul.mubr.f32.gmra.mrb[0].mxu0 %v1169
  %v1459 = vpop.f32.mrb[0].mxu0
  %v1460 = vadd.f32 %v1351, %v1459
  %v1461 = vpop.f32.mrb[0].mxu0
  %v1462 = vadd.f32 %v1355, %v1461
  %1463 = vmatprep.mubr.f32.mxu0 %v1173
  %1464 = vmatmul.mubr.f32.gmra.mrb[0].mxu0 %v1172
  %v1465 = vpop.f32.mrb[0].mxu0
  %v1466 = vadd.f32 %v1351, %v1465
  %v1467 = vpop.f32.mrb[0].mxu0
  %v1468 = vadd.f32 %v1355, %v1467
  %1469 = vmatprep.mubr.f32.mxu0 %v1176
  %1470 = vmatmul.mubr.f32.gmra.mrb[0].mxu0 %v1175
  %v1471 = vpop.f32.mrb[0].mxu0
  %v1472 = vadd.f32 %v1351, %v1471
  %v1473 = vpop.f32.mrb[0].mxu0
  %v1474 = vadd.f32 %v1355, %v1473
  %1475 = vmatprep.mubr.f32.mxu0 %v1179
  %1476 = vmatmul.mubr.f32.gmra.mrb[0].mxu0 %v1178
  %v1477 = vpop.f32.mrb[0].mxu0
  %v1478 = vadd.f32 %v1351, %v1477
  %v1479 = vpop.f32.mrb[0].mxu0
  %v1480 = vadd.f32 %v1355, %v1479
  %1481 = vmatprep.mubr.f32.mxu0 %v1182
  %1482 = vmatmul.mubr.f32.gmra.mrb[0].mxu0 %v1181
  %v1483 = vpop.f32.mrb[0].mxu0
  %v1484 = vadd.f32 %v1351, %v1483
  %v1485 = vpop.f32.mrb[0].mxu0
  %v1486 = vadd.f32 %v1355, %v1485
  %1487 = vmatprep.mubr.f32.mxu0 %v1185
  %1488 = vmatmul.mubr.f32.gmra.mrb[0].mxu0 %v1184
  %v1489 = vpop.f32.mrb[0].mxu0
  %v1490 = vadd.f32 %v1351, %v1489
  %v1491 = vpop.f32.mrb[0].mxu0
  %v1492 = vadd.f32 %v1355, %v1491
  %1493 = vmatprep.mubr.f32.mxu0 %v1188
  %1494 = vmatmul.mubr.f32.gmra.mrb[0].mxu0 %v1187
  %v1495 = vpop.f32.mrb[0].mxu0
  %v1496 = vadd.f32 %v1351, %v1495
  %v1497 = vpop.f32.mrb[0].mxu0
  %v1498 = vadd.f32 %v1355, %v1497
  %1499 = vmatprep.mubr.f32.mxu0 %v1191
  %1500 = vmatmul.mubr.f32.gmra.mrb[0].mxu0 %v1190
  %v1501 = vpop.f32.mrb[0].mxu0
  %v1502 = vadd.f32 %v1351, %v1501
  %v1503 = vpop.f32.mrb[0].mxu0
  %v1504 = vadd.f32 %v1355, %v1503
  %1505 = vmatprep.mubr.f32.mxu0 %v1194
  %1506 = vmatmul.mubr.f32.gmra.mrb[0].mxu0 %v1193
  %v1507 = vpop.f32.mrb[0].mxu0
  %v1508 = vadd.f32 %v1351, %v1507
  %v1509 = vpop.f32.mrb[0].mxu0
  %v1510 = vadd.f32 %v1355, %v1509
  %1511 = vmatprep.mubr.f32.mxu0 %v1197
  %1512 = vmatmul.mubr.f32.gmra.mrb[0].mxu0 %v1196
  %v1513 = vpop.f32.mrb[0].mxu0
  %v1514 = vadd.f32 %v1351, %v1513
  %v1515 = vpop.f32.mrb[0].mxu0
  %v1516 = vadd.f32 %v1355, %v1515
  %1517 = vmatprep.mubr.f32.mxu0 %v1200
  %1518 = vmatmul.mubr.f32.gmra.mrb[0].mxu0 %v1199
  %v1519 = vpop.f32.mrb[0].mxu0
  %v1520 = vadd.f32 %v1351, %v1519
  %v1521 = vpop.f32.mrb[0].mxu0
  %v1522 = vadd.f32 %v1355, %v1521
  %1523 = vdwg.mxu0
  %1524 = vmatprep.subr.mxu0 %v1299
  %1525 = vmatpush1.msra.mxu0 %v1298
  %1526 = vmatprep.subr.mxu0 %v1302
  %1527 = vmatpush1.msra.mxu0 %v1301
  %1528 = vmatprep.subr.mxu0 %v1305
  %1529 = vmatpush1.msra.mxu0 %v1304
  %1530 = vmatprep.subr.mxu0 %v1308
  %1531 = vmatpush1.msra.mxu0 %v1307
  %1532 = vmatprep.subr.mxu0 %v1311
  %1533 = vmatpush1.msra.mxu0 %v1310
  %1534 = vmatprep.subr.mxu0 %v1314
  %1535 = vmatpush1.msra.mxu0 %v1313
  %1536 = vmatprep.subr.mxu0 %v1317
  %1537 = vmatpush1.msra.mxu0 %v1316
  %1538 = vmatprep.subr.mxu0 %v1320
  %1539 = vmatpush1.msra.mxu0 %v1319
  %1540 = vmatprep.subr.mxu0 %v1323
  %1541 = vmatpush1.msra.mxu0 %v1322
  %1542 = vmatprep.subr.mxu0 %v1326
  %1543 = vmatpush1.msra.mxu0 %v1325
  %1544 = vmatprep.subr.mxu0 %v1329
  %1545 = vmatpush1.msra.mxu0 %v1328
  %1546 = vmatprep.subr.mxu0 %v1332
  %1547 = vmatpush1.msra.mxu0 %v1331
  %1548 = vmatprep.subr.mxu0 %v1335
  %1549 = vmatpush1.msra.mxu0 %v1334
  %1550 = vmatprep.subr.mxu0 %v1338
  %1551 = vmatpush1.msra.mxu0 %v1337
  %1552 = vmatprep.subr.mxu0 %v1341
  %1553 = vmatpush1.msra.mxu0 %v1340
  %1554 = vmatprep.subr.mxu0 %v1344
  %1555 = vmatpush1.msra.mxu0 %v1343
  %1556 = vmatprep.subr.mxu0 0.0
  %1557 = vmatpush1.msra.mxu0 0.0
  %1558 = vmatprep.subr.mxu0 0.0
  %1559 = vmatpush1.msra.mxu0 0.0
  %1560 = vmatprep.subr.mxu0 0.0
  %1561 = vmatpush1.msra.mxu0 0.0
  %1562 = vmatprep.subr.mxu0 0.0
  %1563 = vmatpush1.msra.mxu0 0.0
  %1564 = vmatprep.subr.mxu0 0.0
  %1565 = vmatpush1.msra.mxu0 0.0
  %1566 = vmatprep.subr.mxu0 0.0
  %1567 = vmatpush1.msra.mxu0 0.0
  %1568 = vmatprep.subr.mxu0 0.0
  %1569 = vmatpush1.msra.mxu0 0.0
  %1570 = vmatprep.subr.mxu0 0.0
  %1571 = vmatpush1.msra.mxu0 0.0
  %1572 = vmatprep.subr.mxu0 0.0
  %1573 = vmatpush1.msra.mxu0 0.0
  %1574 = vmatprep.subr.mxu0 0.0
  %1575 = vmatpush1.msra.mxu0 0.0
  %1576 = vmatprep.subr.mxu0 0.0
  %1577 = vmatpush1.msra.mxu0 0.0
  %1578 = vmatprep.subr.mxu0 0.0
  %1579 = vmatpush1.msra.mxu0 0.0
  %1580 = vmatprep.subr.mxu0 0.0
  %1581 = vmatpush1.msra.mxu0 0.0
  %1582 = vmatprep.subr.mxu0 0.0
  %1583 = vmatpush1.msra.mxu0 0.0
  %1584 = vmatprep.subr.mxu0 0.0
  %1585 = vmatpush1.msra.mxu0 0.0
  %1586 = vmatprep.subr.mxu0 0.0
  %1587 = vmatpush1.msra.mxu0 0.0
  %1588 = vmatprep.mubr.f32.mxu0 0.0
  %1589 = vmatmul.mubr.f32.gmra.mrb[0].mxu0 %v1156
  %v1590 = vpop.f32.mrb[0].mxu0
  %v1591 = vadd.f32 %v1430, %v1590
  %v1592 = vpop.f32.mrb[0].mxu0
  %v1593 = vadd.f32 %v1432, %v1592
  %1594 = vmatprep.mubr.f32.mxu0 0.0
  %1595 = vmatmul.mubr.f32.gmra.mrb[0].mxu0 %v1159
  %v1596 = vpop.f32.mrb[0].mxu0
  %v1597 = vadd.f32 %v1436, %v1596
  %v1598 = vpop.f32.mrb[0].mxu0
  %v1599 = vadd.f32 %v1438, %v1598
  %1600 = vmatprep.mubr.f32.mxu0 0.0
  %1601 = vmatmul.mubr.f32.gmra.mrb[0].mxu0 %v1162
  %v1602 = vpop.f32.mrb[0].mxu0
  %v1603 = vadd.f32 %v1442, %v1602
  %v1604 = vpop.f32.mrb[0].mxu0
  %v1605 = vadd.f32 %v1444, %v1604
  %1606 = vmatprep.mubr.f32.mxu0 0.0
  %1607 = vmatmul.mubr.f32.gmra.mrb[0].mxu0 %v1165
  %v1608 = vpop.f32.mrb[0].mxu0
  %v1609 = vadd.f32 %v1448, %v1608
  %v1610 = vpop.f32.mrb[0].mxu0
  %v1611 = vadd.f32 %v1450, %v1610
  %1612 = vmatprep.mubr.f32.mxu0 0.0
  %1613 = vmatmul.mubr.f32.gmra.mrb[0].mxu0 %v1168
  %v1614 = vpop.f32.mrb[0].mxu0
  %v1615 = vadd.f32 %v1454, %v1614
  %v1616 = vpop.f32.mrb[0].mxu0
  %v1617 = vadd.f32 %v1456, %v1616
  %1618 = vmatprep.mubr.f32.mxu0 0.0
  %1619 = vmatmul.mubr.f32.gmra.mrb[0].mxu0 %v1171
  %v1620 = vpop.f32.mrb[0].mxu0
  %v1621 = vadd.f32 %v1460, %v1620
  %v1622 = vpop.f32.mrb[0].mxu0
  %v1623 = vadd.f32 %v1462, %v1622
  %1624 = vmatprep.mubr.f32.mxu0 0.0
  %1625 = vmatmul.mubr.f32.gmra.mrb[0].mxu0 %v1174
  %v1626 = vpop.f32.mrb[0].mxu0
  %v1627 = vadd.f32 %v1466, %v1626
  %v1628 = vpop.f32.mrb[0].mxu0
  %v1629 = vadd.f32 %v1468, %v1628
  %1630 = vmatprep.mubr.f32.mxu0 0.0
  %1631 = vmatmul.mubr.f32.gmra.mrb[0].mxu0 %v1177
  %v1632 = vpop.f32.mrb[0].mxu0
  %v1633 = vadd.f32 %v1472, %v1632
  %v1634 = vpop.f32.mrb[0].mxu0
  %v1635 = vadd.f32 %v1474, %v1634
  %1636 = vmatprep.mubr.f32.mxu0 0.0
  %1637 = vmatmul.mubr.f32.gmra.mrb[0].mxu0 %v1180
  %v1638 = vpop.f32.mrb[0].mxu0
  %v1639 = vadd.f32 %v1478, %v1638
  %v1640 = vpop.f32.mrb[0].mxu0
  %v1641 = vadd.f32 %v1480, %v1640
  %1642 = vmatprep.mubr.f32.mxu0 0.0
  %1643 = vmatmul.mubr.f32.gmra.mrb[0].mxu0 %v1183
  %v1644 = vpop.f32.mrb[0].mxu0
  %v1645 = vadd.f32 %v1484, %v1644
  %v1646 = vpop.f32.mrb[0].mxu0
  %v1647 = vadd.f32 %v1486, %v1646
  %1648 = vmatprep.mubr.f32.mxu0 0.0
  %1649 = vmatmul.mubr.f32.gmra.mrb[0].mxu0 %v1186
  %v1650 = vpop.f32.mrb[0].mxu0
  %v1651 = vadd.f32 %v1490, %v1650
  %v1652 = vpop.f32.mrb[0].mxu0
  %v1653 = vadd.f32 %v1492, %v1652
  %1654 = vmatprep.mubr.f32.mxu0 0.0
  %1655 = vmatmul.mubr.f32.gmra.mrb[0].mxu0 %v1189
  %v1656 = vpop.f32.mrb[0].mxu0
  %v1657 = vadd.f32 %v1496, %v1656
  %v1658 = vpop.f32.mrb[0].mxu0
  %v1659 = vadd.f32 %v1498, %v1658
  %1660 = vmatprep.mubr.f32.mxu0 0.0
  %1661 = vmatmul.mubr.f32.gmra.mrb[0].mxu0 %v1192
  %v1662 = vpop.f32.mrb[0].mxu0
  %v1663 = vadd.f32 %v1502, %v1662
  %v1664 = vpop.f32.mrb[0].mxu0
  %v1665 = vadd.f32 %v1504, %v1664
  %1666 = vmatprep.mubr.f32.mxu0 0.0
  %1667 = vmatmul.mubr.f32.gmra.mrb[0].mxu0 %v1195
  %v1668 = vpop.f32.mrb[0].mxu0
  %v1669 = vadd.f32 %v1508, %v1668
  %v1670 = vpop.f32.mrb[0].mxu0
  %v1671 = vadd.f32 %v1510, %v1670
  %1672 = vmatprep.mubr.f32.mxu0 0.0
  %1673 = vmatmul.mubr.f32.gmra.mrb[0].mxu0 %v1198
  %v1674 = vpop.f32.mrb[0].mxu0
  %v1675 = vadd.f32 %v1514, %v1674
  %v1676 = vpop.f32.mrb[0].mxu0
  %v1677 = vadd.f32 %v1516, %v1676
  %1678 = vmatprep.mubr.f32.mxu0 0.0
  %1679 = vmatmul.mubr.f32.gmra.mrb[0].mxu0 %v1201
  %v1680 = vpop.f32.mrb[0].mxu0
  %v1681 = vadd.f32 %v1520, %v1680
  %v1682 = vpop.f32.mrb[0].mxu0
  %v1683 = vadd.f32 %v1522, %v1682
  %1684 = vdwg.mxu0
  %1685 = vmatprep.subr.mxu0 0.0
  %1686 = vmatpush1.msra.mxu0 %v1204
  %1687 = vmatprep.subr.mxu0 0.0
  %1688 = vmatpush1.msra.mxu0 %v1207
  %1689 = vmatprep.subr.mxu0 0.0
  %1690 = vmatpush1.msra.mxu0 %v1210
  %1691 = vmatprep.subr.mxu0 0.0
  %1692 = vmatpush1.msra.mxu0 %v1213
  %1693 = vmatprep.subr.mxu0 0.0
  %1694 = vmatpush1.msra.mxu0 %v1216
  %1695 = vmatprep.subr.mxu0 0.0
  %1696 = vmatpush1.msra.mxu0 %v1219
  %1697 = vmatprep.subr.mxu0 0.0
  %1698 = vmatpush1.msra.mxu0 %v1222
  %1699 = vmatprep.subr.mxu0 0.0
  %1700 = vmatpush1.msra.mxu0 %v1225
  %1701 = vmatprep.subr.mxu0 0.0
  %1702 = vmatpush1.msra.mxu0 %v1228
  %1703 = vmatprep.subr.mxu0 0.0
  %1704 = vmatpush1.msra.mxu0 %v1231
  %1705 = vmatprep.subr.mxu0 0.0
  %1706 = vmatpush1.msra.mxu0 %v1234
  %1707 = vmatprep.subr.mxu0 0.0
  %1708 = vmatpush1.msra.mxu0 %v1237
  %1709 = vmatprep.subr.mxu0 0.0
  %1710 = vmatpush1.msra.mxu0 %v1240
  %1711 = vmatprep.subr.mxu0 0.0
  %1712 = vmatpush1.msra.mxu0 %v1243
  %1713 = vmatprep.subr.mxu0 0.0
  %1714 = vmatpush1.msra.mxu0 %v1246
  %1715 = vmatprep.subr.mxu0 0.0
  %1716 = vmatpush1.msra.mxu0 %v1249
  %1717 = vmatprep.subr.mxu0 0.0
  %1718 = vmatpush1.msra.mxu0 %v1252
  %1719 = vmatprep.subr.mxu0 0.0
  %1720 = vmatpush1.msra.mxu0 %v1255
  %1721 = vmatprep.subr.mxu0 0.0
  %1722 = vmatpush1.msra.mxu0 %v1258
  %1723 = vmatprep.subr.mxu0 0.0
  %1724 = vmatpush1.msra.mxu0 %v1261
  %1725 = vmatprep.subr.mxu0 0.0
  %1726 = vmatpush1.msra.mxu0 %v1264
  %1727 = vmatprep.subr.mxu0 0.0
  %1728 = vmatpush1.msra.mxu0 %v1267
  %1729 = vmatprep.subr.mxu0 0.0
  %1730 = vmatpush1.msra.mxu0 %v1270
  %1731 = vmatprep.subr.mxu0 0.0
  %1732 = vmatpush1.msra.mxu0 %v1273
  %1733 = vmatprep.subr.mxu0 0.0
  %1734 = vmatpush1.msra.mxu0 %v1276
  %1735 = vmatprep.subr.mxu0 0.0
  %1736 = vmatpush1.msra.mxu0 %v1279
  %1737 = vmatprep.subr.mxu0 0.0
  %1738 = vmatpush1.msra.mxu0 %v1282
  %1739 = vmatprep.subr.mxu0 0.0
  %1740 = vmatpush1.msra.mxu0 %v1285
  %1741 = vmatprep.subr.mxu0 0.0
  %1742 = vmatpush1.msra.mxu0 %v1288
  %1743 = vmatprep.subr.mxu0 0.0
  %1744 = vmatpush1.msra.mxu0 %v1291
  %1745 = vmatprep.subr.mxu0 0.0
  %1746 = vmatpush1.msra.mxu0 %v1294
  %1747 = vmatprep.subr.mxu0 0.0
  %1748 = vmatpush1.msra.mxu0 %v1297
  %1749 = vmatprep.mubr.f32.mxu0 %v1155
  %1750 = vmatmul.mubr.f32.gmra.mrb[0].mxu0 %v1154
  %v1751 = vpop.f32.mrb[0].mxu0
  %v1752 = vadd.f32 %v1359, %v1751
  %v1753 = vpop.f32.mrb[0].mxu0
  %1754 = vmatprep.mubr.f32.mxu0 %v1158
  %1755 = vmatmul.mubr.f32.gmra.mrb[0].mxu0 %v1157
  %v1756 = vpop.f32.mrb[0].mxu0
  %v1757 = vadd.f32 %v1359, %v1756
  %v1758 = vpop.f32.mrb[0].mxu0
  %1759 = vmatprep.mubr.f32.mxu0 %v1161
  %1760 = vmatmul.mubr.f32.gmra.mrb[0].mxu0 %v1160
  %v1761 = vpop.f32.mrb[0].mxu0
  %v1762 = vadd.f32 %v1359, %v1761
  %v1763 = vpop.f32.mrb[0].mxu0
  %1764 = vmatprep.mubr.f32.mxu0 %v1164
  %1765 = vmatmul.mubr.f32.gmra.mrb[0].mxu0 %v1163
  %v1766 = vpop.f32.mrb[0].mxu0
  %v1767 = vadd.f32 %v1359, %v1766
  %v1768 = vpop.f32.mrb[0].mxu0
  %1769 = vmatprep.mubr.f32.mxu0 %v1167
  %1770 = vmatmul.mubr.f32.gmra.mrb[0].mxu0 %v1166
  %v1771 = vpop.f32.mrb[0].mxu0
  %v1772 = vadd.f32 %v1359, %v1771
  %v1773 = vpop.f32.mrb[0].mxu0
  %1774 = vmatprep.mubr.f32.mxu0 %v1170
  %1775 = vmatmul.mubr.f32.gmra.mrb[0].mxu0 %v1169
  %v1776 = vpop.f32.mrb[0].mxu0
  %v1777 = vadd.f32 %v1359, %v1776
  %v1778 = vpop.f32.mrb[0].mxu0
  %1779 = vmatprep.mubr.f32.mxu0 %v1173
  %1780 = vmatmul.mubr.f32.gmra.mrb[0].mxu0 %v1172
  %v1781 = vpop.f32.mrb[0].mxu0
  %v1782 = vadd.f32 %v1359, %v1781
  %v1783 = vpop.f32.mrb[0].mxu0
  %1784 = vmatprep.mubr.f32.mxu0 %v1176
  %1785 = vmatmul.mubr.f32.gmra.mrb[0].mxu0 %v1175
  %v1786 = vpop.f32.mrb[0].mxu0
  %v1787 = vadd.f32 %v1359, %v1786
  %v1788 = vpop.f32.mrb[0].mxu0
  %1789 = vmatprep.mubr.f32.mxu0 %v1179
  %1790 = vmatmul.mubr.f32.gmra.mrb[0].mxu0 %v1178
  %v1791 = vpop.f32.mrb[0].mxu0
  %v1792 = vadd.f32 %v1359, %v1791
  %v1793 = vpop.f32.mrb[0].mxu0
  %1794 = vmatprep.mubr.f32.mxu0 %v1182
  %1795 = vmatmul.mubr.f32.gmra.mrb[0].mxu0 %v1181
  %v1796 = vpop.f32.mrb[0].mxu0
  %v1797 = vadd.f32 %v1359, %v1796
  %v1798 = vpop.f32.mrb[0].mxu0
  %1799 = vmatprep.mubr.f32.mxu0 %v1185
  %1800 = vmatmul.mubr.f32.gmra.mrb[0].mxu0 %v1184
  %v1801 = vpop.f32.mrb[0].mxu0
  %v1802 = vadd.f32 %v1359, %v1801
  %v1803 = vpop.f32.mrb[0].mxu0
  %1804 = vmatprep.mubr.f32.mxu0 %v1188
  %1805 = vmatmul.mubr.f32.gmra.mrb[0].mxu0 %v1187
  %v1806 = vpop.f32.mrb[0].mxu0
  %v1807 = vadd.f32 %v1359, %v1806
  %v1808 = vpop.f32.mrb[0].mxu0
  %1809 = vmatprep.mubr.f32.mxu0 %v1191
  %1810 = vmatmul.mubr.f32.gmra.mrb[0].mxu0 %v1190
  %v1811 = vpop.f32.mrb[0].mxu0
  %v1812 = vadd.f32 %v1359, %v1811
  %v1813 = vpop.f32.mrb[0].mxu0
  %1814 = vmatprep.mubr.f32.mxu0 %v1194
  %1815 = vmatmul.mubr.f32.gmra.mrb[0].mxu0 %v1193
  %v1816 = vpop.f32.mrb[0].mxu0
  %v1817 = vadd.f32 %v1359, %v1816
  %v1818 = vpop.f32.mrb[0].mxu0
  %1819 = vmatprep.mubr.f32.mxu0 %v1197
  %1820 = vmatmul.mubr.f32.gmra.mrb[0].mxu0 %v1196
  %v1821 = vpop.f32.mrb[0].mxu0
  %v1822 = vadd.f32 %v1359, %v1821
  %v1823 = vpop.f32.mrb[0].mxu0
  %1824 = vmatprep.mubr.f32.mxu0 %v1200
  %1825 = vmatmul.mubr.f32.gmra.mrb[0].mxu0 %v1199
  %v1826 = vpop.f32.mrb[0].mxu0
  %v1827 = vadd.f32 %v1359, %v1826
  %v1828 = vpop.f32.mrb[0].mxu0
  %1829 = vdwg.mxu0
  %1830 = vmatprep.subr.mxu0 0.0
  %1831 = vmatpush1.msra.mxu0 %v1300
  %1832 = vmatprep.subr.mxu0 0.0
  %1833 = vmatpush1.msra.mxu0 %v1303
  %1834 = vmatprep.subr.mxu0 0.0
  %1835 = vmatpush1.msra.mxu0 %v1306
  %1836 = vmatprep.subr.mxu0 0.0
  %1837 = vmatpush1.msra.mxu0 %v1309
  %1838 = vmatprep.subr.mxu0 0.0
  %1839 = vmatpush1.msra.mxu0 %v1312
  %1840 = vmatprep.subr.mxu0 0.0
  %1841 = vmatpush1.msra.mxu0 %v1315
  %1842 = vmatprep.subr.mxu0 0.0
  %1843 = vmatpush1.msra.mxu0 %v1318
  %1844 = vmatprep.subr.mxu0 0.0
  %1845 = vmatpush1.msra.mxu0 %v1321
  %1846 = vmatprep.subr.mxu0 0.0
  %1847 = vmatpush1.msra.mxu0 %v1324
  %1848 = vmatprep.subr.mxu0 0.0
  %1849 = vmatpush1.msra.mxu0 %v1327
  %1850 = vmatprep.subr.mxu0 0.0
  %1851 = vmatpush1.msra.mxu0 %v1330
  %1852 = vmatprep.subr.mxu0 0.0
  %1853 = vmatpush1.msra.mxu0 %v1333
  %1854 = vmatprep.subr.mxu0 0.0
  %1855 = vmatpush1.msra.mxu0 %v1336
  %1856 = vmatprep.subr.mxu0 0.0
  %1857 = vmatpush1.msra.mxu0 %v1339
  %1858 = vmatprep.subr.mxu0 0.0
  %1859 = vmatpush1.msra.mxu0 %v1342
  %1860 = vmatprep.subr.mxu0 0.0
  %1861 = vmatpush1.msra.mxu0 %v1345
  %1862 = vmatprep.subr.mxu0 0.0
  %1863 = vmatpush1.msra.mxu0 0.0
  %1864 = vmatprep.subr.mxu0 0.0
  %1865 = vmatpush1.msra.mxu0 0.0
  %1866 = vmatprep.subr.mxu0 0.0
  %1867 = vmatpush1.msra.mxu0 0.0
  %1868 = vmatprep.subr.mxu0 0.0
  %1869 = vmatpush1.msra.mxu0 0.0
  %1870 = vmatprep.subr.mxu0 0.0
  %1871 = vmatpush1.msra.mxu0 0.0
  %1872 = vmatprep.subr.mxu0 0.0
  %1873 = vmatpush1.msra.mxu0 0.0
  %1874 = vmatprep.subr.mxu0 0.0
  %1875 = vmatpush1.msra.mxu0 0.0
  %1876 = vmatprep.subr.mxu0 0.0
  %1877 = vmatpush1.msra.mxu0 0.0
  %1878 = vmatprep.subr.mxu0 0.0
  %1879 = vmatpush1.msra.mxu0 0.0
  %1880 = vmatprep.subr.mxu0 0.0
  %1881 = vmatpush1.msra.mxu0 0.0
  %1882 = vmatprep.subr.mxu0 0.0
  %1883 = vmatpush1.msra.mxu0 0.0
  %1884 = vmatprep.subr.mxu0 0.0
  %1885 = vmatpush1.msra.mxu0 0.0
  %1886 = vmatprep.subr.mxu0 0.0
  %1887 = vmatpush1.msra.mxu0 0.0
  %1888 = vmatprep.subr.mxu0 0.0
  %1889 = vmatpush1.msra.mxu0 0.0
  %1890 = vmatprep.subr.mxu0 0.0
  %1891 = vmatpush1.msra.mxu0 0.0
  %1892 = vmatprep.subr.mxu0 0.0
  %1893 = vmatpush1.msra.mxu0 0.0
  %1894 = vmatprep.mubr.f32.mxu0 0.0
  %1895 = vmatmul.mubr.f32.gmra.mrb[0].mxu0 %v1156
  %v1896 = vpop.f32.mrb[0].mxu0
  %v1897 = vadd.f32 %v1752, %v1896
  %v1898 = vpop.f32.mrb[0].mxu0
  %1899 = vmatprep.mubr.f32.mxu0 0.0
  %1900 = vmatmul.mubr.f32.gmra.mrb[0].mxu0 %v1159
  %v1901 = vpop.f32.mrb[0].mxu0
  %v1902 = vadd.f32 %v1757, %v1901
  %v1903 = vpop.f32.mrb[0].mxu0
  %1904 = vmatprep.mubr.f32.mxu0 0.0
  %1905 = vmatmul.mubr.f32.gmra.mrb[0].mxu0 %v1162
  %v1906 = vpop.f32.mrb[0].mxu0
  %v1907 = vadd.f32 %v1762, %v1906
  %v1908 = vpop.f32.mrb[0].mxu0
  %1909 = vmatprep.mubr.f32.mxu0 0.0
  %1910 = vmatmul.mubr.f32.gmra.mrb[0].mxu0 %v1165
  %v1911 = vpop.f32.mrb[0].mxu0
  %v1912 = vadd.f32 %v1767, %v1911
  %v1913 = vpop.f32.mrb[0].mxu0
  %1914 = vmatprep.mubr.f32.mxu0 0.0
  %1915 = vmatmul.mubr.f32.gmra.mrb[0].mxu0 %v1168
  %v1916 = vpop.f32.mrb[0].mxu0
  %v1917 = vadd.f32 %v1772, %v1916
  %v1918 = vpop.f32.mrb[0].mxu0
  %1919 = vmatprep.mubr.f32.mxu0 0.0
  %1920 = vmatmul.mubr.f32.gmra.mrb[0].mxu0 %v1171
  %v1921 = vpop.f32.mrb[0].mxu0
  %v1922 = vadd.f32 %v1777, %v1921
  %v1923 = vpop.f32.mrb[0].mxu0
  %1924 = vmatprep.mubr.f32.mxu0 0.0
  %1925 = vmatmul.mubr.f32.gmra.mrb[0].mxu0 %v1174
  %v1926 = vpop.f32.mrb[0].mxu0
  %v1927 = vadd.f32 %v1782, %v1926
  %v1928 = vpop.f32.mrb[0].mxu0
  %1929 = vmatprep.mubr.f32.mxu0 0.0
  %1930 = vmatmul.mubr.f32.gmra.mrb[0].mxu0 %v1177
  %v1931 = vpop.f32.mrb[0].mxu0
  %v1932 = vadd.f32 %v1787, %v1931
  %v1933 = vpop.f32.mrb[0].mxu0
  %1934 = vmatprep.mubr.f32.mxu0 0.0
  %1935 = vmatmul.mubr.f32.gmra.mrb[0].mxu0 %v1180
  %v1936 = vpop.f32.mrb[0].mxu0
  %v1937 = vadd.f32 %v1792, %v1936
  %v1938 = vpop.f32.mrb[0].mxu0
  %1939 = vmatprep.mubr.f32.mxu0 0.0
  %1940 = vmatmul.mubr.f32.gmra.mrb[0].mxu0 %v1183
  %v1941 = vpop.f32.mrb[0].mxu0
  %v1942 = vadd.f32 %v1797, %v1941
  %v1943 = vpop.f32.mrb[0].mxu0
  %1944 = vmatprep.mubr.f32.mxu0 0.0
  %1945 = vmatmul.mubr.f32.gmra.mrb[0].mxu0 %v1186
  %v1946 = vpop.f32.mrb[0].mxu0
  %v1947 = vadd.f32 %v1802, %v1946
  %v1948 = vpop.f32.mrb[0].mxu0
  %1949 = vmatprep.mubr.f32.mxu0 0.0
  %1950 = vmatmul.mubr.f32.gmra.mrb[0].mxu0 %v1189
  %v1951 = vpop.f32.mrb[0].mxu0
  %v1952 = vadd.f32 %v1807, %v1951
  %v1953 = vpop.f32.mrb[0].mxu0
  %1954 = vmatprep.mubr.f32.mxu0 0.0
  %1955 = vmatmul.mubr.f32.gmra.mrb[0].mxu0 %v1192
  %v1956 = vpop.f32.mrb[0].mxu0
  %v1957 = vadd.f32 %v1812, %v1956
  %v1958 = vpop.f32.mrb[0].mxu0
  %1959 = vmatprep.mubr.f32.mxu0 0.0
  %1960 = vmatmul.mubr.f32.gmra.mrb[0].mxu0 %v1195
  %v1961 = vpop.f32.mrb[0].mxu0
  %v1962 = vadd.f32 %v1817, %v1961
  %v1963 = vpop.f32.mrb[0].mxu0
  %1964 = vmatprep.mubr.f32.mxu0 0.0
  %1965 = vmatmul.mubr.f32.gmra.mrb[0].mxu0 %v1198
  %v1966 = vpop.f32.mrb[0].mxu0
  %v1967 = vadd.f32 %v1822, %v1966
  %v1968 = vpop.f32.mrb[0].mxu0
  %1969 = vmatprep.mubr.f32.mxu0 0.0
  %1970 = vmatmul.mubr.f32.gmra.mrb[0].mxu0 %v1201
  %v1971 = vpop.f32.mrb[0].mxu0
  %v1972 = vadd.f32 %v1827, %v1971
  %v1973 = vpop.f32.mrb[0].mxu0
  %1974 = vdwg.mxu0
  %1975 = vst [vmem:[%s7] sm:$0xff] %v1591
  %1976 = vst [vmem:[%s7 + $0x8] sm:$0xff] %v1593
  %vm1977 = vcmask 261120
  %1978 = vst.msk [vmem:[%s7 + $0x10] sm:$0xff] %vm1977, %v1897
  %1979 = vst [vmem:[%s7 + $0x18] sm:$0xff] %v1597
  %1980 = vst [vmem:[%s7 + $0x20] sm:$0xff] %v1599
  %1981 = vst.msk [vmem:[%s7 + $0x28] sm:$0xff] %vm1977, %v1902
  %1982 = vst [vmem:[%s7 + $0x30] sm:$0xff] %v1603
  %1983 = vst [vmem:[%s7 + $0x38] sm:$0xff] %v1605
  %1984 = vst.msk [vmem:[%s7 + $0x40] sm:$0xff] %vm1977, %v1907
  %1985 = vst [vmem:[%s7 + $0x48] sm:$0xff] %v1609
  %1986 = vst [vmem:[%s7 + $0x50] sm:$0xff] %v1611
  %1987 = vst.msk [vmem:[%s7 + $0x58] sm:$0xff] %vm1977, %v1912
  %1988 = vst [vmem:[%s7 + $0x60] sm:$0xff] %v1615
  %1989 = vst [vmem:[%s7 + $0x68] sm:$0xff] %v1617
  %1990 = vst.msk [vmem:[%s7 + $0x70] sm:$0xff] %vm1977, %v1917
  %1991 = vst [vmem:[%s7 + $0x78] sm:$0xff] %v1621
  %1992 = vst [vmem:[%s7 + $0x80] sm:$0xff] %v1623
  %1993 = vst.msk [vmem:[%s7 + $0x88] sm:$0xff] %vm1977, %v1922
  %1994 = vst [vmem:[%s7 + $0x90] sm:$0xff] %v1627
  %1995 = vst [vmem:[%s7 + $0x98] sm:$0xff] %v1629
  %1996 = vst.msk [vmem:[%s7 + $0xa0] sm:$0xff] %vm1977, %v1927
  %1997 = vst [vmem:[%s7 + $0xa8] sm:$0xff] %v1633
  %1998 = vst [vmem:[%s7 + $0xb0] sm:$0xff] %v1635
  %1999 = vst.msk [vmem:[%s7 + $0xb8] sm:$0xff] %vm1977, %v1932
  %2000 = vst [vmem:[%s7 + $0xc0] sm:$0xff] %v1639
  %2001 = vst [vmem:[%s7 + $0xc8] sm:$0xff] %v1641
  %2002 = vst.msk [vmem:[%s7 + $0xd0] sm:$0xff] %vm1977, %v1937
  %2003 = vst [vmem:[%s7 + $0xd8] sm:$0xff] %v1645
  %2004 = vst [vmem:[%s7 + $0xe0] sm:$0xff] %v1647
  %2005 = vst.msk [vmem:[%s7 + $0xe8] sm:$0xff] %vm1977, %v1942
  %2006 = vst [vmem:[%s7 + $0xf0] sm:$0xff] %v1651
  %2007 = vst [vmem:[%s7 + $0xf8] sm:$0xff] %v1653
  %2008 = vst.msk [vmem:[%s7 + $0x100] sm:$0xff] %vm1977, %v1947
  %2009 = vst [vmem:[%s7 + $0x108] sm:$0xff] %v1657
  %2010 = vst [vmem:[%s7 + $0x110] sm:$0xff] %v1659
  %2011 = vst.msk [vmem:[%s7 + $0x118] sm:$0xff] %vm1977, %v1952
  %2012 = vst [vmem:[%s7 + $0x120] sm:$0xff] %v1663
  %2013 = vst [vmem:[%s7 + $0x128] sm:$0xff] %v1665
  %2014 = vst.msk [vmem:[%s7 + $0x130] sm:$0xff] %vm1977, %v1957
  %2015 = vst [vmem:[%s7 + $0x138] sm:$0xff] %v1669
  %2016 = vst [vmem:[%s7 + $0x140] sm:$0xff] %v1671
  %2017 = vst.msk [vmem:[%s7 + $0x148] sm:$0xff] %vm1977, %v1962
  %2018 = vst [vmem:[%s7 + $0x150] sm:$0xff] %v1675
  %2019 = vst [vmem:[%s7 + $0x158] sm:$0xff] %v1677
  %2020 = vst.msk [vmem:[%s7 + $0x160] sm:$0xff] %vm1977, %v1967
  %2021 = vst [vmem:[%s7 + $0x168] sm:$0xff] %v1681
  %2022 = vst [vmem:[%s7 + $0x170] sm:$0xff] %v1683
  %2023 = vst.msk [vmem:[%s7 + $0x178] sm:$0xff] %vm1977, %v1972
  // Predicated region
  $region30: #{tpu_custom_call.1} parent=0 // pred_check
    _
  $region31: #{tpu_custom_call.1} parent=0 // pred_check_branch
    %2025 = sbr.rel (0) target = $region33
  $region32: #{tpu_custom_call.1} parent=0 // pred_region
    _
  $region33: #{tpu_custom_call.1} parent=0 // pred_fallthru
    _
  // Predicated region
  $region34: #{tpu_custom_call.1} parent=0 // pred_check
    _
  $region35: #{tpu_custom_call.1} parent=0 // pred_check_branch
    %2027 = sbr.rel (0) target = $region37
  $region36: #{tpu_custom_call.1} parent=0 // pred_region
    _
  $region37: #{tpu_custom_call.1} parent=0 // pred_fallthru
    _

</llo_original>
